<compile_context>
chip_gen: v7x
topology: tpu7x:2x2x1
jax: 0.10.0
libtpu: 0.0.40
codegen_flags: <defaults>
</compile_context>

<pallas_src>
import jax
import jax.numpy as jnp
import numpy as np
from jax import lax
from jax.experimental import pallas as pl
from jax.experimental.pallas import tpu as pltpu

# Small shapes consistent with the module's forward semantics.
# BATCH=8 so every per-step tile is sublane-aligned; 8*HIDDEN=128 fills lanes.
SEQ, BATCH, EMBED, HIDDEN, OUT = 8, 8, 32, 16, 2

LANES = 8 * HIDDEN                       # 128 (full lane width)
# Row offsets of each parameter block inside the packed blob (8-row aligned).
R_WIH = 0                                # (2E, 8H) block-diag input proj (T)
R_BLSTM = R_WIH + 2 * EMBED              # (1, 8H) folded LSTM bias
R_WHH = R_BLSTM + 8                      # (2H, 8H) block-diag hidden proj (T)
R_W2 = R_WHH + 2 * HIDDEN                # (2H+E, H) W2.T, lane-padded
R_B2 = R_W2 + 2 * HIDDEN + EMBED         # (1, H) b2, lane-padded
R_WOUT = R_B2 + 8                        # (H, OUT) wout.T, padded to 128 rows
R_BOUT = R_WOUT + LANES                  # (1, OUT) bout, lane-padded
BLOB_ROWS = R_BOUT + 8                   # 312


def rcnn_kernel(x2_ref,    # (S*B, 2E): cols [0:E]=x[S-1-t], [E:2E]=x[t] per row-block t
                blob_ref,  # (BLOB_ROWS, 128) packed parameters
                out_ref,   # (B, OUT)
                enc_ref):  # (S*B, 2H+E) scratch: [h_fwd | h_bwd | x]
    B, O = out_ref.shape
    SB = x2_ref.shape[0]
    S = SB // B
    H = HIDDEN
    E = EMBED

    # ---- Hoisted input projection for BOTH directions, bias folded in. ----
    # One lane-full MXU pass: (S*B, 2E) @ (2E, 8H).  Row block t of xg holds
    # fwd gate pre-acts for time t (interleaved cols) and bwd pre-acts for
    # time S-1-t, so each recurrence step reads exactly one row block.
    xg = (jnp.dot(x2_ref[...], blob_ref[R_WIH:R_WIH + 2 * E, :],
                  preferred_element_type=jnp.float32)
          + blob_ref[R_BLSTM:R_BLSTM + 1, :])                  # (S*B, 8H)

    whh_bd_T = blob_ref[R_WHH:R_WHH + 2 * H, :]                # (2H, 8H)

    # x goes straight into the encoder buffer; lane offsets match (E:2E -> 2H:).
    enc_ref[:, 2 * H:] = x2_ref[:, E:2 * E]

    # ---- Fused bidirectional recurrence, fully unrolled (S=8, static). ----
    # Per step: ONE (8,32)@(32,128) matmul, ONE sigmoid and ONE tanh over a
    # full (8,128) vreg, then lane slices of the gate groups.
    hc = jnp.zeros((B, 2 * H), jnp.float32)   # [h_fwd | h_bwd]
    cc = jnp.zeros((B, 2 * H), jnp.float32)   # [c_fwd | c_bwd]
    for t in range(S):
        rf = t * B               # fwd time t row block (also bwd pre-act row)
        rb = (S - 1 - t) * B     # row block where this step's bwd h belongs
        gates = xg[rf:rf + B, :] + jnp.dot(hc, whh_bd_T,
                                           preferred_element_type=jnp.float32)
        sig = jax.nn.sigmoid(gates)     # 1 vreg -> 1 EUP pass
        tnh = jnp.tanh(gates)           # 1 vreg -> 1 EUP pass
        i = sig[:, 0 * H:2 * H]         # [i_f | i_b]
        f = sig[:, 2 * H:4 * H]         # [f_f | f_b]
        g = tnh[:, 4 * H:6 * H]         # [g_f | g_b]
        o = sig[:, 6 * H:8 * H]         # [o_f | o_b]
        cc = f * cc + i * g
        hc = o * jnp.tanh(cc)
        enc_ref[rf:rf + B, 0:H] = hc[:, 0:H]            # fwd h(t)
        enc_ref[rb:rb + B, H:2 * H] = hc[:, H:2 * H]    # bwd h(S-1-t)

    # ---- Encoder: ONE K=(2H+E) matmul over the packed [h_f | h_b | x] buf. ----
    # W2.T is lane-padded with zeros beyond col H, so y cols >= H are exactly 0.
    y = (jnp.dot(enc_ref[...], blob_ref[R_W2:R_W2 + 2 * H + E, :],
                 preferred_element_type=jnp.float32)
         + blob_ref[R_B2:R_B2 + 1, :])                  # (S*B, 128)

    # ---- Max over time (== F.max_pool1d over seq): pairwise tree reduce. ----
    parts = [y[t * B:(t + 1) * B, :] for t in range(S)]
    while len(parts) > 1:
        nxt = [jnp.maximum(parts[k], parts[k + 1]) for k in range(0, len(parts) - 1, 2)]
        if len(parts) % 2:
            nxt.append(parts[-1])
        parts = nxt
    max_y = parts[0]                                     # (B, 128); cols >= H are 0

    # ---- hidden2out + LogSoftmax (implicit dim=1 for 2-D input). ----
    # wout.T is zero-padded to 128 rows so it consumes max_y directly.
    z_full = (jnp.dot(max_y, blob_ref[R_WOUT:R_WOUT + LANES, :],
                      preferred_element_type=jnp.float32)
              + blob_ref[R_BOUT:R_BOUT + 1, :])          # (B, 128)
    z = z_full[:, 0:O]                                   # (B, OUT)
    zs = z - jnp.max(z, axis=1, keepdims=True)
    out_ref[...] = zs - jnp.log(jnp.sum(jnp.exp(zs), axis=1, keepdims=True))


def pack_params(params):
    """Host-side (free) layout work: pack the 12 raw parameters into a single
    lane-padded (BLOB_ROWS, 128) f32 blob -> one parameter DMA.

    NOTE: this expects ONE bias per LSTM direction, i.e. b = b_ih + b_hh
    already summed.  When importing real PyTorch nn.LSTM weights, sum
    bias_ih_l0 + bias_hh_l0 (and the _reverse pair) before packing.
    """
    (wih_f, whh_f, b_f, wih_b, whh_b, b_b,
     w2f, w2b, w2x, b2, wout, bout) = params
    H, E, O = HIDDEN, EMBED, OUT
    f32 = jnp.float32

    # Interleaved gate-column layout: [i_f i_b f_f f_b g_f g_b o_f o_b], H each,
    # so each contiguous 2H lane group is one gate for [fwd | bwd].
    def cols(gate, direction):
        s = (2 * gate + direction) * H
        return slice(s, s + H)

    # (2E, 8H) block-diagonal input projection (transposed).
    # Rows 0:E act on x_reversed (bwd chain), rows E:2E act on x (fwd chain).
    wih_fT, wih_bT = wih_f.T, wih_b.T                 # (E, 4H), cols [i|f|g|o]
    wih_bd_T = jnp.zeros((2 * E, 8 * H), f32)
    for g in range(4):
        wih_bd_T = wih_bd_T.at[E:2 * E, cols(g, 0)].set(wih_fT[:, g * H:(g + 1) * H])
        wih_bd_T = wih_bd_T.at[0:E, cols(g, 1)].set(wih_bT[:, g * H:(g + 1) * H])

    # (1, 8H) folded LSTM bias in the interleaved layout.
    b_lstm = jnp.zeros((1, 8 * H), f32)
    for g in range(4):
        b_lstm = b_lstm.at[:, cols(g, 0)].set(b_f[:, g * H:(g + 1) * H])
        b_lstm = b_lstm.at[:, cols(g, 1)].set(b_b[:, g * H:(g + 1) * H])

    # (2H, 8H) block-diagonal hidden projection (transposed); h = [h_f | h_b].
    whh_fT, whh_bT = whh_f.T, whh_b.T
    whh_bd_T = jnp.zeros((2 * H, 8 * H), f32)
    for g in range(4):
        whh_bd_T = whh_bd_T.at[0:H, cols(g, 0)].set(whh_fT[:, g * H:(g + 1) * H])
        whh_bd_T = whh_bd_T.at[H:2 * H, cols(g, 1)].set(whh_bT[:, g * H:(g + 1) * H])

    # Encoder / head weights, lane- and row-padded with zeros to 128.
    w2_T = jnp.concatenate([w2f, w2b, w2x], axis=1).T             # (2H+E, H)
    w2_pad = jnp.zeros((2 * H + E, LANES), f32).at[:, :H].set(w2_T)
    wout_pad = jnp.zeros((LANES, LANES), f32).at[:H, :O].set(wout.T)

    blob = jnp.zeros((BLOB_ROWS, LANES), f32)
    blob = blob.at[R_WIH:R_WIH + 2 * E, :].set(wih_bd_T)
    blob = blob.at[R_BLSTM, :].set(b_lstm[0])
    blob = blob.at[R_WHH:R_WHH + 2 * H, :].set(whh_bd_T)
    blob = blob.at[R_W2:R_W2 + 2 * H + E, :].set(w2_pad)
    blob = blob.at[R_B2, :H].set(b2[0])
    blob = blob.at[R_WOUT:R_WOUT + LANES, :].set(wout_pad)
    blob = blob.at[R_BOUT, :O].set(bout[0])
    return blob


def rcnn_forward(x, params):
    # x: (SEQ, BATCH, EMBED) time-major.
    # Kernel input: row block t = [x[S-1-t] | x[t]] so the single block-diagonal
    # input projection produces fwd(t) and bwd(S-1-t) pre-activations together,
    # and x lands at lanes [E:2E] which match the encoder buffer's x columns.
    x_flat = x.reshape(SEQ * BATCH, EMBED)
    x_rev = x[::-1].reshape(SEQ * BATCH, EMBED)
    x2 = jnp.concatenate([x_rev, x_flat], axis=1)          # (S*B, 2E)
    blob = pack_params(params)

    vmem = pl.BlockSpec(memory_space=pltpu.MemorySpace.VMEM)
    return pl.pallas_call(
        rcnn_kernel,
        out_shape=jax.ShapeDtypeStruct((BATCH, OUT), jnp.float32),
        in_specs=[vmem, vmem],
        out_specs=vmem,
        scratch_shapes=[
            pltpu.VMEM((SEQ * BATCH, 2 * HIDDEN + EMBED), jnp.float32),
        ],
    )(x2, blob)


def rcnn_reference(x, params):
    """Pure-JAX reference of the same forward pass (for a sanity check)."""
    (wih_f, whh_f, b_f, wih_b, whh_b, b_b,
     w2f, w2b, w2x, b2, wout, bout) = params
    H = HIDDEN

    def run_dir(wih, whh, b, xs):
        def step(carry, x_t):
            h, c = carry
            g = x_t @ wih.T + h @ whh.T + b[0]
            i = jax.nn.sigmoid(g[:, 0 * H:1 * H])
            f = jax.nn.sigmoid(g[:, 1 * H:2 * H])
            gg = jnp.tanh(g[:, 2 * H:3 * H])
            o = jax.nn.sigmoid(g[:, 3 * H:4 * H])
            c = f * c + i * gg
            h = o * jnp.tanh(c)
            return (h, c), h
        init = (jnp.zeros((BATCH, H)), jnp.zeros((BATCH, H)))
        _, hs = lax.scan(step, init, xs)
        return hs

    hf = run_dir(wih_f, whh_f, b_f, x)
    hb = run_dir(wih_b, whh_b, b_b, x[::-1])[::-1]
    y = hf @ w2f.T + hb @ w2b.T + x @ w2x.T + b2[0]      # (seq, batch, H)
    max_y = jnp.max(y, axis=0)                            # (batch, H)
    z = max_y @ wout.T + bout[0]
    return jax.nn.log_softmax(z, axis=1)


def init_params(key):
    ks = jax.random.split(key, 12)
    kf = 1.0 / np.sqrt(HIDDEN)

    def u(k, shape, bound):
        return jax.random.uniform(k, shape, jnp.float32, -bound, bound)

    # LSTM (forward and reverse directions); bias = b_ih + b_hh folded together.
    wih_f = u(ks[0], (4 * HIDDEN, EMBED), kf)
    whh_f = u(ks[1], (4 * HIDDEN, HIDDEN), kf)
    b_f = u(ks[2], (1, 4 * HIDDEN), kf)
    wih_b = u(ks[3], (4 * HIDDEN, EMBED), kf)
    whh_b = u(ks[4], (4 * HIDDEN, HIDDEN), kf)
    b_b = u(ks[5], (1, 4 * HIDDEN), kf)

    # W2: Linear(2*hidden + embed -> hidden), pre-split into [h_fwd | h_bwd | x].
    k2 = 1.0 / np.sqrt(2 * HIDDEN + EMBED)
    w2 = u(ks[6], (HIDDEN, 2 * HIDDEN + EMBED), k2)
    w2f, w2b, w2x = w2[:, :HIDDEN], w2[:, HIDDEN:2 * HIDDEN], w2[:, 2 * HIDDEN:]
    b2 = u(ks[7], (1, HIDDEN), k2)

    # hidden2out: Linear(hidden -> output_size).
    ko = 1.0 / np.sqrt(HIDDEN)
    wout = u(ks[8], (OUT, HIDDEN), ko)
    bout = u(ks[9], (1, OUT), ko)

    return (wih_f, whh_f, b_f, wih_b, whh_b, b_b,
            w2f, w2b, w2x, b2, wout, bout)


if __name__ == "__main__":
    key = jax.random.PRNGKey(0)
    kx, kp = jax.random.split(key)
    x = jax.random.normal(kx, (SEQ, BATCH, EMBED), jnp.float32)
    params = init_params(kp)

    out = jax.block_until_ready(rcnn_forward(x, params))
    ref = jax.block_until_ready(rcnn_reference(x, params))

    assert out.shape == (BATCH, OUT)
    np.testing.assert_allclose(np.asarray(out), np.asarray(ref),
                               rtol=1e-5, atol=1e-5)
    print("KERNEL_OK")
</pallas_src>

<mosaic_0001>
module attributes {stable_mosaic.version = 11 : i64} {
  func.func @rcnn_kernel(%arg0: memref<64x64xf32, #tpu.memory_space<vmem>>, %arg1: memref<312x128xf32, #tpu.memory_space<vmem>>, %arg2: memref<8x2xf32, #tpu.memory_space<vmem>>, %arg3: memref<64x64xf32, #tpu.memory_space<vmem>>) attributes {dimension_semantics = [], scalar_prefetch = 0 : i64, scratch_operands = 1 : i64, tpu.core_type = #tpu.core_type<tc>} {
    %c0 = arith.constant 0 : index
    %c0_0 = arith.constant 0 : index
    %0 = vector.load %arg0[%c0, %c0_0] : memref<64x64xf32, #tpu.memory_space<vmem>>, vector<64x64xf32>
    %c0_1 = arith.constant 0 : index
    %c0_2 = arith.constant 0 : index
    %1 = vector.load %arg1[%c0_1, %c0_2] : memref<312x128xf32, #tpu.memory_space<vmem>>, vector<64x128xf32>
    %cst = arith.constant dense<0.000000e+00> : vector<64x128xf32>
    %2 = tpu.matmul %0, %1, %cst {dimension_numbers = #tpu.dot_dimension_numbers<[1], [0], [0], [1], [0, 0, 1, 1], [], []>} : vector<64x64xf32>, vector<64x128xf32>, vector<64x128xf32> -> vector<64x128xf32>
    %c64 = arith.constant 64 : index
    %c0_3 = arith.constant 0 : index
    %3 = vector.load %arg1[%c64, %c0_3] : memref<312x128xf32, #tpu.memory_space<vmem>>, vector<1x128xf32>
    %4 = vector.broadcast %3 : vector<1x128xf32> to vector<64x128xf32>
    %5 = arith.addf %2, %4 : vector<64x128xf32>
    %c72 = arith.constant 72 : index
    %c0_4 = arith.constant 0 : index
    %6 = vector.load %arg1[%c72, %c0_4] : memref<312x128xf32, #tpu.memory_space<vmem>>, vector<32x128xf32>
    %c0_5 = arith.constant 0 : index
    %c32 = arith.constant 32 : index
    %7 = vector.load %arg0[%c0_5, %c32] : memref<64x64xf32, #tpu.memory_space<vmem>>, vector<64x32xf32>
    %c0_6 = arith.constant 0 : index
    %c32_7 = arith.constant 32 : index
    %8 = vector.load %arg3[%c0_6, %c32_7] : memref<64x64xf32, #tpu.memory_space<vmem>>, vector<64x32xf32>
    tpu.vector_store %arg3[%c0_6, %c32_7], %7 {strides = array<i32>} : memref<64x64xf32, #tpu.memory_space<vmem>>, vector<64x32xf32>,
    %cst_8 = arith.constant 0.000000e+00 : f32
    %9 = vector.broadcast %cst_8 : f32 to vector<8x32xf32>
    %cst_9 = arith.constant 0.000000e+00 : f32
    %10 = vector.broadcast %cst_9 : f32 to vector<8x32xf32>
    %11 = vector.extract_strided_slice %5 {offsets = [0, 0], sizes = [8, 128], strides = [1, 1]} : vector<64x128xf32> to vector<8x128xf32>
    %cst_10 = arith.constant dense<0.000000e+00> : vector<8x128xf32>
    %12 = tpu.matmul %9, %6, %cst_10 {dimension_numbers = #tpu.dot_dimension_numbers<[1], [0], [0], [1], [0, 0, 1, 1], [], []>} : vector<8x32xf32>, vector<32x128xf32>, vector<8x128xf32> -> vector<8x128xf32>
    %13 = arith.addf %11, %12 : vector<8x128xf32>
    %14 = arith.negf %13 : vector<8x128xf32>
    %15 = math.exp %14 : vector<8x128xf32>
    %cst_11 = arith.constant 1.000000e+00 : f32
    %16 = vector.broadcast %cst_11 : f32 to vector<8x128xf32>
    %17 = arith.addf %16, %15 : vector<8x128xf32>
    %18 = arith.divf %16, %17 : vector<8x128xf32>
    %19 = math.tanh %13 : vector<8x128xf32>
    %20 = vector.extract_strided_slice %18 {offsets = [0, 0], sizes = [8, 32], strides = [1, 1]} : vector<8x128xf32> to vector<8x32xf32>
    %21 = vector.extract_strided_slice %18 {offsets = [0, 32], sizes = [8, 32], strides = [1, 1]} : vector<8x128xf32> to vector<8x32xf32>
    %22 = vector.extract_strided_slice %19 {offsets = [0, 64], sizes = [8, 32], strides = [1, 1]} : vector<8x128xf32> to vector<8x32xf32>
    %23 = vector.extract_strided_slice %18 {offsets = [0, 96], sizes = [8, 32], strides = [1, 1]} : vector<8x128xf32> to vector<8x32xf32>
    %24 = arith.mulf %21, %10 : vector<8x32xf32>
    %25 = arith.mulf %20, %22 : vector<8x32xf32>
    %26 = arith.addf %24, %25 : vector<8x32xf32>
    %27 = math.tanh %26 : vector<8x32xf32>
    %28 = arith.mulf %23, %27 : vector<8x32xf32>
    %29 = vector.extract_strided_slice %28 {offsets = [0, 0], sizes = [8, 16], strides = [1, 1]} : vector<8x32xf32> to vector<8x16xf32>
    %c0_12 = arith.constant 0 : index
    %c0_13 = arith.constant 0 : index
    %30 = vector.load %arg3[%c0_12, %c0_13] : memref<64x64xf32, #tpu.memory_space<vmem>>, vector<8x16xf32>
    tpu.vector_store %arg3[%c0_12, %c0_13], %29 {strides = array<i32>} : memref<64x64xf32, #tpu.memory_space<vmem>>, vector<8x16xf32>,
    %31 = vector.extract_strided_slice %28 {offsets = [0, 16], sizes = [8, 16], strides = [1, 1]} : vector<8x32xf32> to vector<8x16xf32>
    %c56 = arith.constant 56 : index
    %c16 = arith.constant 16 : index
    %32 = vector.load %arg3[%c56, %c16] : memref<64x64xf32, #tpu.memory_space<vmem>>, vector<8x16xf32>
    tpu.vector_store %arg3[%c56, %c16], %31 {strides = array<i32>} : memref<64x64xf32, #tpu.memory_space<vmem>>, vector<8x16xf32>,
    %33 = vector.extract_strided_slice %5 {offsets = [8, 0], sizes = [8, 128], strides = [1, 1]} : vector<64x128xf32> to vector<8x128xf32>
    %cst_14 = arith.constant dense<0.000000e+00> : vector<8x128xf32>
    %34 = tpu.matmul %28, %6, %cst_14 {dimension_numbers = #tpu.dot_dimension_numbers<[1], [0], [0], [1], [0, 0, 1, 1], [], []>} : vector<8x32xf32>, vector<32x128xf32>, vector<8x128xf32> -> vector<8x128xf32>
    %35 = arith.addf %33, %34 : vector<8x128xf32>
    %36 = arith.negf %35 : vector<8x128xf32>
    %37 = math.exp %36 : vector<8x128xf32>
    %cst_15 = arith.constant 1.000000e+00 : f32
    %38 = vector.broadcast %cst_15 : f32 to vector<8x128xf32>
    %39 = arith.addf %38, %37 : vector<8x128xf32>
    %40 = arith.divf %38, %39 : vector<8x128xf32>
    %41 = math.tanh %35 : vector<8x128xf32>
    %42 = vector.extract_strided_slice %40 {offsets = [0, 0], sizes = [8, 32], strides = [1, 1]} : vector<8x128xf32> to vector<8x32xf32>
    %43 = vector.extract_strided_slice %40 {offsets = [0, 32], sizes = [8, 32], strides = [1, 1]} : vector<8x128xf32> to vector<8x32xf32>
    %44 = vector.extract_strided_slice %41 {offsets = [0, 64], sizes = [8, 32], strides = [1, 1]} : vector<8x128xf32> to vector<8x32xf32>
    %45 = vector.extract_strided_slice %40 {offsets = [0, 96], sizes = [8, 32], strides = [1, 1]} : vector<8x128xf32> to vector<8x32xf32>
    %46 = arith.mulf %43, %26 : vector<8x32xf32>
    %47 = arith.mulf %42, %44 : vector<8x32xf32>
    %48 = arith.addf %46, %47 : vector<8x32xf32>
    %49 = math.tanh %48 : vector<8x32xf32>
    %50 = arith.mulf %45, %49 : vector<8x32xf32>
    %51 = vector.extract_strided_slice %50 {offsets = [0, 0], sizes = [8, 16], strides = [1, 1]} : vector<8x32xf32> to vector<8x16xf32>
    %c8 = arith.constant 8 : index
    %c0_16 = arith.constant 0 : index
    %52 = vector.load %arg3[%c8, %c0_16] : memref<64x64xf32, #tpu.memory_space<vmem>>, vector<8x16xf32>
    tpu.vector_store %arg3[%c8, %c0_16], %51 {strides = array<i32>} : memref<64x64xf32, #tpu.memory_space<vmem>>, vector<8x16xf32>,
    %53 = vector.extract_strided_slice %50 {offsets = [0, 16], sizes = [8, 16], strides = [1, 1]} : vector<8x32xf32> to vector<8x16xf32>
    %c48 = arith.constant 48 : index
    %c16_17 = arith.constant 16 : index
    %54 = vector.load %arg3[%c48, %c16_17] : memref<64x64xf32, #tpu.memory_space<vmem>>, vector<8x16xf32>
    tpu.vector_store %arg3[%c48, %c16_17], %53 {strides = array<i32>} : memref<64x64xf32, #tpu.memory_space<vmem>>, vector<8x16xf32>,
    %55 = vector.extract_strided_slice %5 {offsets = [16, 0], sizes = [8, 128], strides = [1, 1]} : vector<64x128xf32> to vector<8x128xf32>
    %cst_18 = arith.constant dense<0.000000e+00> : vector<8x128xf32>
    %56 = tpu.matmul %50, %6, %cst_18 {dimension_numbers = #tpu.dot_dimension_numbers<[1], [0], [0], [1], [0, 0, 1, 1], [], []>} : vector<8x32xf32>, vector<32x128xf32>, vector<8x128xf32> -> vector<8x128xf32>
    %57 = arith.addf %55, %56 : vector<8x128xf32>
    %58 = arith.negf %57 : vector<8x128xf32>
    %59 = math.exp %58 : vector<8x128xf32>
    %cst_19 = arith.constant 1.000000e+00 : f32
    %60 = vector.broadcast %cst_19 : f32 to vector<8x128xf32>
    %61 = arith.addf %60, %59 : vector<8x128xf32>
    %62 = arith.divf %60, %61 : vector<8x128xf32>
    %63 = math.tanh %57 : vector<8x128xf32>
    %64 = vector.extract_strided_slice %62 {offsets = [0, 0], sizes = [8, 32], strides = [1, 1]} : vector<8x128xf32> to vector<8x32xf32>
    %65 = vector.extract_strided_slice %62 {offsets = [0, 32], sizes = [8, 32], strides = [1, 1]} : vector<8x128xf32> to vector<8x32xf32>
    %66 = vector.extract_strided_slice %63 {offsets = [0, 64], sizes = [8, 32], strides = [1, 1]} : vector<8x128xf32> to vector<8x32xf32>
    %67 = vector.extract_strided_slice %62 {offsets = [0, 96], sizes = [8, 32], strides = [1, 1]} : vector<8x128xf32> to vector<8x32xf32>
    %68 = arith.mulf %65, %48 : vector<8x32xf32>
    %69 = arith.mulf %64, %66 : vector<8x32xf32>
    %70 = arith.addf %68, %69 : vector<8x32xf32>
    %71 = math.tanh %70 : vector<8x32xf32>
    %72 = arith.mulf %67, %71 : vector<8x32xf32>
    %73 = vector.extract_strided_slice %72 {offsets = [0, 0], sizes = [8, 16], strides = [1, 1]} : vector<8x32xf32> to vector<8x16xf32>
    %c16_20 = arith.constant 16 : index
    %c0_21 = arith.constant 0 : index
    %74 = vector.load %arg3[%c16_20, %c0_21] : memref<64x64xf32, #tpu.memory_space<vmem>>, vector<8x16xf32>
    tpu.vector_store %arg3[%c16_20, %c0_21], %73 {strides = array<i32>} : memref<64x64xf32, #tpu.memory_space<vmem>>, vector<8x16xf32>,
    %75 = vector.extract_strided_slice %72 {offsets = [0, 16], sizes = [8, 16], strides = [1, 1]} : vector<8x32xf32> to vector<8x16xf32>
    %c40 = arith.constant 40 : index
    %c16_22 = arith.constant 16 : index
    %76 = vector.load %arg3[%c40, %c16_22] : memref<64x64xf32, #tpu.memory_space<vmem>>, vector<8x16xf32>
    tpu.vector_store %arg3[%c40, %c16_22], %75 {strides = array<i32>} : memref<64x64xf32, #tpu.memory_space<vmem>>, vector<8x16xf32>,
    %77 = vector.extract_strided_slice %5 {offsets = [24, 0], sizes = [8, 128], strides = [1, 1]} : vector<64x128xf32> to vector<8x128xf32>
    %cst_23 = arith.constant dense<0.000000e+00> : vector<8x128xf32>
    %78 = tpu.matmul %72, %6, %cst_23 {dimension_numbers = #tpu.dot_dimension_numbers<[1], [0], [0], [1], [0, 0, 1, 1], [], []>} : vector<8x32xf32>, vector<32x128xf32>, vector<8x128xf32> -> vector<8x128xf32>
    %79 = arith.addf %77, %78 : vector<8x128xf32>
    %80 = arith.negf %79 : vector<8x128xf32>
    %81 = math.exp %80 : vector<8x128xf32>
    %cst_24 = arith.constant 1.000000e+00 : f32
    %82 = vector.broadcast %cst_24 : f32 to vector<8x128xf32>
    %83 = arith.addf %82, %81 : vector<8x128xf32>
    %84 = arith.divf %82, %83 : vector<8x128xf32>
    %85 = math.tanh %79 : vector<8x128xf32>
    %86 = vector.extract_strided_slice %84 {offsets = [0, 0], sizes = [8, 32], strides = [1, 1]} : vector<8x128xf32> to vector<8x32xf32>
    %87 = vector.extract_strided_slice %84 {offsets = [0, 32], sizes = [8, 32], strides = [1, 1]} : vector<8x128xf32> to vector<8x32xf32>
    %88 = vector.extract_strided_slice %85 {offsets = [0, 64], sizes = [8, 32], strides = [1, 1]} : vector<8x128xf32> to vector<8x32xf32>
    %89 = vector.extract_strided_slice %84 {offsets = [0, 96], sizes = [8, 32], strides = [1, 1]} : vector<8x128xf32> to vector<8x32xf32>
    %90 = arith.mulf %87, %70 : vector<8x32xf32>
    %91 = arith.mulf %86, %88 : vector<8x32xf32>
    %92 = arith.addf %90, %91 : vector<8x32xf32>
    %93 = math.tanh %92 : vector<8x32xf32>
    %94 = arith.mulf %89, %93 : vector<8x32xf32>
    %95 = vector.extract_strided_slice %94 {offsets = [0, 0], sizes = [8, 16], strides = [1, 1]} : vector<8x32xf32> to vector<8x16xf32>
    %c24 = arith.constant 24 : index
    %c0_25 = arith.constant 0 : index
    %96 = vector.load %arg3[%c24, %c0_25] : memref<64x64xf32, #tpu.memory_space<vmem>>, vector<8x16xf32>
    tpu.vector_store %arg3[%c24, %c0_25], %95 {strides = array<i32>} : memref<64x64xf32, #tpu.memory_space<vmem>>, vector<8x16xf32>,
    %97 = vector.extract_strided_slice %94 {offsets = [0, 16], sizes = [8, 16], strides = [1, 1]} : vector<8x32xf32> to vector<8x16xf32>
    %c32_26 = arith.constant 32 : index
    %c16_27 = arith.constant 16 : index
    %98 = vector.load %arg3[%c32_26, %c16_27] : memref<64x64xf32, #tpu.memory_space<vmem>>, vector<8x16xf32>
    tpu.vector_store %arg3[%c32_26, %c16_27], %97 {strides = array<i32>} : memref<64x64xf32, #tpu.memory_space<vmem>>, vector<8x16xf32>,
    %99 = vector.extract_strided_slice %5 {offsets = [32, 0], sizes = [8, 128], strides = [1, 1]} : vector<64x128xf32> to vector<8x128xf32>
    %cst_28 = arith.constant dense<0.000000e+00> : vector<8x128xf32>
    %100 = tpu.matmul %94, %6, %cst_28 {dimension_numbers = #tpu.dot_dimension_numbers<[1], [0], [0], [1], [0, 0, 1, 1], [], []>} : vector<8x32xf32>, vector<32x128xf32>, vector<8x128xf32> -> vector<8x128xf32>
    %101 = arith.addf %99, %100 : vector<8x128xf32>
    %102 = arith.negf %101 : vector<8x128xf32>
    %103 = math.exp %102 : vector<8x128xf32>
    %cst_29 = arith.constant 1.000000e+00 : f32
    %104 = vector.broadcast %cst_29 : f32 to vector<8x128xf32>
    %105 = arith.addf %104, %103 : vector<8x128xf32>
    %106 = arith.divf %104, %105 : vector<8x128xf32>
    %107 = math.tanh %101 : vector<8x128xf32>
    %108 = vector.extract_strided_slice %106 {offsets = [0, 0], sizes = [8, 32], strides = [1, 1]} : vector<8x128xf32> to vector<8x32xf32>
    %109 = vector.extract_strided_slice %106 {offsets = [0, 32], sizes = [8, 32], strides = [1, 1]} : vector<8x128xf32> to vector<8x32xf32>
    %110 = vector.extract_strided_slice %107 {offsets = [0, 64], sizes = [8, 32], strides = [1, 1]} : vector<8x128xf32> to vector<8x32xf32>
    %111 = vector.extract_strided_slice %106 {offsets = [0, 96], sizes = [8, 32], strides = [1, 1]} : vector<8x128xf32> to vector<8x32xf32>
    %112 = arith.mulf %109, %92 : vector<8x32xf32>
    %113 = arith.mulf %108, %110 : vector<8x32xf32>
    %114 = arith.addf %112, %113 : vector<8x32xf32>
    %115 = math.tanh %114 : vector<8x32xf32>
    %116 = arith.mulf %111, %115 : vector<8x32xf32>
    %117 = vector.extract_strided_slice %116 {offsets = [0, 0], sizes = [8, 16], strides = [1, 1]} : vector<8x32xf32> to vector<8x16xf32>
    %c32_30 = arith.constant 32 : index
    %c0_31 = arith.constant 0 : index
    %118 = vector.load %arg3[%c32_30, %c0_31] : memref<64x64xf32, #tpu.memory_space<vmem>>, vector<8x16xf32>
    tpu.vector_store %arg3[%c32_30, %c0_31], %117 {strides = array<i32>} : memref<64x64xf32, #tpu.memory_space<vmem>>, vector<8x16xf32>,
    %119 = vector.extract_strided_slice %116 {offsets = [0, 16], sizes = [8, 16], strides = [1, 1]} : vector<8x32xf32> to vector<8x16xf32>
    %c24_32 = arith.constant 24 : index
    %c16_33 = arith.constant 16 : index
    %120 = vector.load %arg3[%c24_32, %c16_33] : memref<64x64xf32, #tpu.memory_space<vmem>>, vector<8x16xf32>
    tpu.vector_store %arg3[%c24_32, %c16_33], %119 {strides = array<i32>} : memref<64x64xf32, #tpu.memory_space<vmem>>, vector<8x16xf32>,
    %121 = vector.extract_strided_slice %5 {offsets = [40, 0], sizes = [8, 128], strides = [1, 1]} : vector<64x128xf32> to vector<8x128xf32>
    %cst_34 = arith.constant dense<0.000000e+00> : vector<8x128xf32>
    %122 = tpu.matmul %116, %6, %cst_34 {dimension_numbers = #tpu.dot_dimension_numbers<[1], [0], [0], [1], [0, 0, 1, 1], [], []>} : vector<8x32xf32>, vector<32x128xf32>, vector<8x128xf32> -> vector<8x128xf32>
    %123 = arith.addf %121, %122 : vector<8x128xf32>
    %124 = arith.negf %123 : vector<8x128xf32>
    %125 = math.exp %124 : vector<8x128xf32>
    %cst_35 = arith.constant 1.000000e+00 : f32
    %126 = vector.broadcast %cst_35 : f32 to vector<8x128xf32>
    %127 = arith.addf %126, %125 : vector<8x128xf32>
    %128 = arith.divf %126, %127 : vector<8x128xf32>
    %129 = math.tanh %123 : vector<8x128xf32>
    %130 = vector.extract_strided_slice %128 {offsets = [0, 0], sizes = [8, 32], strides = [1, 1]} : vector<8x128xf32> to vector<8x32xf32>
    %131 = vector.extract_strided_slice %128 {offsets = [0, 32], sizes = [8, 32], strides = [1, 1]} : vector<8x128xf32> to vector<8x32xf32>
    %132 = vector.extract_strided_slice %129 {offsets = [0, 64], sizes = [8, 32], strides = [1, 1]} : vector<8x128xf32> to vector<8x32xf32>
    %133 = vector.extract_strided_slice %128 {offsets = [0, 96], sizes = [8, 32], strides = [1, 1]} : vector<8x128xf32> to vector<8x32xf32>
    %134 = arith.mulf %131, %114 : vector<8x32xf32>
    %135 = arith.mulf %130, %132 : vector<8x32xf32>
    %136 = arith.addf %134, %135 : vector<8x32xf32>
    %137 = math.tanh %136 : vector<8x32xf32>
    %138 = arith.mulf %133, %137 : vector<8x32xf32>
    %139 = vector.extract_strided_slice %138 {offsets = [0, 0], sizes = [8, 16], strides = [1, 1]} : vector<8x32xf32> to vector<8x16xf32>
    %c40_36 = arith.constant 40 : index
    %c0_37 = arith.constant 0 : index
    %140 = vector.load %arg3[%c40_36, %c0_37] : memref<64x64xf32, #tpu.memory_space<vmem>>, vector<8x16xf32>
    tpu.vector_store %arg3[%c40_36, %c0_37], %139 {strides = array<i32>} : memref<64x64xf32, #tpu.memory_space<vmem>>, vector<8x16xf32>,
    %141 = vector.extract_strided_slice %138 {offsets = [0, 16], sizes = [8, 16], strides = [1, 1]} : vector<8x32xf32> to vector<8x16xf32>
    %c16_38 = arith.constant 16 : index
    %c16_39 = arith.constant 16 : index
    %142 = vector.load %arg3[%c16_38, %c16_39] : memref<64x64xf32, #tpu.memory_space<vmem>>, vector<8x16xf32>
    tpu.vector_store %arg3[%c16_38, %c16_39], %141 {strides = array<i32>} : memref<64x64xf32, #tpu.memory_space<vmem>>, vector<8x16xf32>,
    %143 = vector.extract_strided_slice %5 {offsets = [48, 0], sizes = [8, 128], strides = [1, 1]} : vector<64x128xf32> to vector<8x128xf32>
    %cst_40 = arith.constant dense<0.000000e+00> : vector<8x128xf32>
    %144 = tpu.matmul %138, %6, %cst_40 {dimension_numbers = #tpu.dot_dimension_numbers<[1], [0], [0], [1], [0, 0, 1, 1], [], []>} : vector<8x32xf32>, vector<32x128xf32>, vector<8x128xf32> -> vector<8x128xf32>
    %145 = arith.addf %143, %144 : vector<8x128xf32>
    %146 = arith.negf %145 : vector<8x128xf32>
    %147 = math.exp %146 : vector<8x128xf32>
    %cst_41 = arith.constant 1.000000e+00 : f32
    %148 = vector.broadcast %cst_41 : f32 to vector<8x128xf32>
    %149 = arith.addf %148, %147 : vector<8x128xf32>
    %150 = arith.divf %148, %149 : vector<8x128xf32>
    %151 = math.tanh %145 : vector<8x128xf32>
    %152 = vector.extract_strided_slice %150 {offsets = [0, 0], sizes = [8, 32], strides = [1, 1]} : vector<8x128xf32> to vector<8x32xf32>
    %153 = vector.extract_strided_slice %150 {offsets = [0, 32], sizes = [8, 32], strides = [1, 1]} : vector<8x128xf32> to vector<8x32xf32>
    %154 = vector.extract_strided_slice %151 {offsets = [0, 64], sizes = [8, 32], strides = [1, 1]} : vector<8x128xf32> to vector<8x32xf32>
    %155 = vector.extract_strided_slice %150 {offsets = [0, 96], sizes = [8, 32], strides = [1, 1]} : vector<8x128xf32> to vector<8x32xf32>
    %156 = arith.mulf %153, %136 : vector<8x32xf32>
    %157 = arith.mulf %152, %154 : vector<8x32xf32>
    %158 = arith.addf %156, %157 : vector<8x32xf32>
    %159 = math.tanh %158 : vector<8x32xf32>
    %160 = arith.mulf %155, %159 : vector<8x32xf32>
    %161 = vector.extract_strided_slice %160 {offsets = [0, 0], sizes = [8, 16], strides = [1, 1]} : vector<8x32xf32> to vector<8x16xf32>
    %c48_42 = arith.constant 48 : index
    %c0_43 = arith.constant 0 : index
    %162 = vector.load %arg3[%c48_42, %c0_43] : memref<64x64xf32, #tpu.memory_space<vmem>>, vector<8x16xf32>
    tpu.vector_store %arg3[%c48_42, %c0_43], %161 {strides = array<i32>} : memref<64x64xf32, #tpu.memory_space<vmem>>, vector<8x16xf32>,
    %163 = vector.extract_strided_slice %160 {offsets = [0, 16], sizes = [8, 16], strides = [1, 1]} : vector<8x32xf32> to vector<8x16xf32>
    %c8_44 = arith.constant 8 : index
    %c16_45 = arith.constant 16 : index
    %164 = vector.load %arg3[%c8_44, %c16_45] : memref<64x64xf32, #tpu.memory_space<vmem>>, vector<8x16xf32>
    tpu.vector_store %arg3[%c8_44, %c16_45], %163 {strides = array<i32>} : memref<64x64xf32, #tpu.memory_space<vmem>>, vector<8x16xf32>,
    %165 = vector.extract_strided_slice %5 {offsets = [56, 0], sizes = [8, 128], strides = [1, 1]} : vector<64x128xf32> to vector<8x128xf32>
    %cst_46 = arith.constant dense<0.000000e+00> : vector<8x128xf32>
    %166 = tpu.matmul %160, %6, %cst_46 {dimension_numbers = #tpu.dot_dimension_numbers<[1], [0], [0], [1], [0, 0, 1, 1], [], []>} : vector<8x32xf32>, vector<32x128xf32>, vector<8x128xf32> -> vector<8x128xf32>
    %167 = arith.addf %165, %166 : vector<8x128xf32>
    %168 = arith.negf %167 : vector<8x128xf32>
    %169 = math.exp %168 : vector<8x128xf32>
    %cst_47 = arith.constant 1.000000e+00 : f32
    %170 = vector.broadcast %cst_47 : f32 to vector<8x128xf32>
    %171 = arith.addf %170, %169 : vector<8x128xf32>
    %172 = arith.divf %170, %171 : vector<8x128xf32>
    %173 = math.tanh %167 : vector<8x128xf32>
    %174 = vector.extract_strided_slice %172 {offsets = [0, 0], sizes = [8, 32], strides = [1, 1]} : vector<8x128xf32> to vector<8x32xf32>
    %175 = vector.extract_strided_slice %172 {offsets = [0, 32], sizes = [8, 32], strides = [1, 1]} : vector<8x128xf32> to vector<8x32xf32>
    %176 = vector.extract_strided_slice %173 {offsets = [0, 64], sizes = [8, 32], strides = [1, 1]} : vector<8x128xf32> to vector<8x32xf32>
    %177 = vector.extract_strided_slice %172 {offsets = [0, 96], sizes = [8, 32], strides = [1, 1]} : vector<8x128xf32> to vector<8x32xf32>
    %178 = arith.mulf %175, %158 : vector<8x32xf32>
    %179 = arith.mulf %174, %176 : vector<8x32xf32>
    %180 = arith.addf %178, %179 : vector<8x32xf32>
    %181 = math.tanh %180 : vector<8x32xf32>
    %182 = arith.mulf %177, %181 : vector<8x32xf32>
    %183 = vector.extract_strided_slice %182 {offsets = [0, 0], sizes = [8, 16], strides = [1, 1]} : vector<8x32xf32> to vector<8x16xf32>
    %c56_48 = arith.constant 56 : index
    %c0_49 = arith.constant 0 : index
    %184 = vector.load %arg3[%c56_48, %c0_49] : memref<64x64xf32, #tpu.memory_space<vmem>>, vector<8x16xf32>
    tpu.vector_store %arg3[%c56_48, %c0_49], %183 {strides = array<i32>} : memref<64x64xf32, #tpu.memory_space<vmem>>, vector<8x16xf32>,
    %185 = vector.extract_strided_slice %182 {offsets = [0, 16], sizes = [8, 16], strides = [1, 1]} : vector<8x32xf32> to vector<8x16xf32>
    %c0_50 = arith.constant 0 : index
    %c16_51 = arith.constant 16 : index
    %186 = vector.load %arg3[%c0_50, %c16_51] : memref<64x64xf32, #tpu.memory_space<vmem>>, vector<8x16xf32>
    tpu.vector_store %arg3[%c0_50, %c16_51], %185 {strides = array<i32>} : memref<64x64xf32, #tpu.memory_space<vmem>>, vector<8x16xf32>,
    %c0_52 = arith.constant 0 : index
    %c0_53 = arith.constant 0 : index
    %187 = vector.load %arg3[%c0_52, %c0_53] : memref<64x64xf32, #tpu.memory_space<vmem>>, vector<64x64xf32>
    %c104 = arith.constant 104 : index
    %c0_54 = arith.constant 0 : index
    %188 = vector.load %arg1[%c104, %c0_54] : memref<312x128xf32, #tpu.memory_space<vmem>>, vector<64x128xf32>
    %cst_55 = arith.constant dense<0.000000e+00> : vector<64x128xf32>
    %189 = tpu.matmul %187, %188, %cst_55 {dimension_numbers = #tpu.dot_dimension_numbers<[1], [0], [0], [1], [0, 0, 1, 1], [], []>} : vector<64x64xf32>, vector<64x128xf32>, vector<64x128xf32> -> vector<64x128xf32>
    %c168 = arith.constant 168 : index
    %c0_56 = arith.constant 0 : index
    %190 = vector.load %arg1[%c168, %c0_56] : memref<312x128xf32, #tpu.memory_space<vmem>>, vector<1x128xf32>
    %191 = vector.broadcast %190 : vector<1x128xf32> to vector<64x128xf32>
    %192 = arith.addf %189, %191 : vector<64x128xf32>
    %193 = vector.extract_strided_slice %192 {offsets = [0, 0], sizes = [8, 128], strides = [1, 1]} : vector<64x128xf32> to vector<8x128xf32>
    %194 = vector.extract_strided_slice %192 {offsets = [8, 0], sizes = [8, 128], strides = [1, 1]} : vector<64x128xf32> to vector<8x128xf32>
    %195 = vector.extract_strided_slice %192 {offsets = [16, 0], sizes = [8, 128], strides = [1, 1]} : vector<64x128xf32> to vector<8x128xf32>
    %196 = vector.extract_strided_slice %192 {offsets = [24, 0], sizes = [8, 128], strides = [1, 1]} : vector<64x128xf32> to vector<8x128xf32>
    %197 = vector.extract_strided_slice %192 {offsets = [32, 0], sizes = [8, 128], strides = [1, 1]} : vector<64x128xf32> to vector<8x128xf32>
    %198 = vector.extract_strided_slice %192 {offsets = [40, 0], sizes = [8, 128], strides = [1, 1]} : vector<64x128xf32> to vector<8x128xf32>
    %199 = vector.extract_strided_slice %192 {offsets = [48, 0], sizes = [8, 128], strides = [1, 1]} : vector<64x128xf32> to vector<8x128xf32>
    %200 = vector.extract_strided_slice %192 {offsets = [56, 0], sizes = [8, 128], strides = [1, 1]} : vector<64x128xf32> to vector<8x128xf32>
    %201 = arith.maximumf %193, %194 : vector<8x128xf32>
    %202 = arith.maximumf %195, %196 : vector<8x128xf32>
    %203 = arith.maximumf %197, %198 : vector<8x128xf32>
    %204 = arith.maximumf %199, %200 : vector<8x128xf32>
    %205 = arith.maximumf %201, %202 : vector<8x128xf32>
    %206 = arith.maximumf %203, %204 : vector<8x128xf32>
    %207 = arith.maximumf %205, %206 : vector<8x128xf32>
    %c176 = arith.constant 176 : index
    %c0_57 = arith.constant 0 : index
    %208 = vector.load %arg1[%c176, %c0_57] : memref<312x128xf32, #tpu.memory_space<vmem>>, vector<128x128xf32>
    %cst_58 = arith.constant dense<0.000000e+00> : vector<8x128xf32>
    %209 = tpu.matmul %207, %208, %cst_58 {dimension_numbers = #tpu.dot_dimension_numbers<[1], [0], [0], [1], [0, 0, 1, 1], [], []>} : vector<8x128xf32>, vector<128x128xf32>, vector<8x128xf32> -> vector<8x128xf32>
    %c304 = arith.constant 304 : index
    %c0_59 = arith.constant 0 : index
    %210 = vector.load %arg1[%c304, %c0_59] : memref<312x128xf32, #tpu.memory_space<vmem>>, vector<1x128xf32>
    %211 = vector.broadcast %210 : vector<1x128xf32> to vector<8x128xf32>
    %212 = arith.addf %209, %211 : vector<8x128xf32>
    %213 = vector.extract_strided_slice %212 {offsets = [0, 0], sizes = [8, 2], strides = [1, 1]} : vector<8x128xf32> to vector<8x2xf32>
    %cst_60 = arith.constant dense<0xFF800000> : vector<8xf32>
    %214 = vector.multi_reduction <maximumf>, %213, %cst_60 [1] : vector<8x2xf32> to vector<8xf32>
    %215 = vector.shape_cast %214 : vector<8xf32> to vector<8x1xf32>
    %216 = vector.broadcast %215 : vector<8x1xf32> to vector<8x2xf32>
    %217 = arith.subf %213, %216 : vector<8x2xf32>
    %218 = math.exp %217 : vector<8x2xf32>
    %cst_61 = arith.constant dense<0.000000e+00> : vector<8xf32>
    %219 = vector.multi_reduction <add>, %218, %cst_61 [1] : vector<8x2xf32> to vector<8xf32>
    %220 = vector.shape_cast %219 : vector<8xf32> to vector<8x1xf32>
    %221 = math.log %220 : vector<8x1xf32>
    %222 = vector.broadcast %221 : vector<8x1xf32> to vector<8x2xf32>
    %223 = arith.subf %217, %222 : vector<8x2xf32>
    %c0_62 = arith.constant 0 : index
    %c0_63 = arith.constant 0 : index
    %224 = vector.load %arg2[%c0_62, %c0_63] : memref<8x2xf32, #tpu.memory_space<vmem>>, vector<8x2xf32>
    tpu.vector_store %arg2[%c0_62, %c0_63], %223 {strides = array<i32>} : memref<8x2xf32, #tpu.memory_space<vmem>>, vector<8x2xf32>,
    return
  }
}

</mosaic_0001>

<llo_original>
// kernel: tpu_custom_call.1
$region0: #{tpu_custom_call.1}
  #allocation0 [shape = 'u32[]', space=smem, size = 0x4, offset = 0x4, fixed_abs, tag = 'smem constant byte address 0x4 - core index']
  #allocation1 [shape = 'u32[144,128]{1,0:T(1,128)}', space=vmem, size = 0x12000, scoped, tag = 'internal scratch']
  #allocation2 [shape = 'f32[64,64]{1,0:T(8,128)}', space=vmem, size = 0x8000, scoped, tag = 'scratch operand']
  %s0 = inlined_call_operand.hbm [shape: f32[64,64], index: 0, kind: input, shape index: {}]
  %s1 = inlined_call_operand.hbm [shape: f32[312,128], index: 1, kind: input, shape index: {}]
  %s2 = inlined_call_operand.vmem [shape: f32[8,2], index: 2, kind: output, shape index: {}]
  %s3 = sld [smem:[#allocation0]]
  $region26: #{tpu_custom_call.1} parent=0
    _
  %s5 = ssub.s32 1, %s3
  %s6 = scalar_select 0, %s5, %s3
  $region1: #{tpu_custom_call.1} parent=0
    #allocation3 [shape = 'u8[32768]{0}', space=vmem, size = 0x8000, scoped, tag = 'input window, operand 0, single buffered']
    #allocation4 [shape = 's32[1]{0}', space=sflag, size = 0x4, scoped, tag = 'scoped memory for tpu_custom_call.1']
    #allocation5 [shape = 'u8[159744]{0}', space=vmem, size = 0x27000, scoped, tag = 'input window, operand 1, single buffered']
    #allocation6 [shape = 's32[1]{0}', space=sflag, size = 0x4, scoped, tag = 'scoped memory for tpu_custom_call.1']
    %7 = vsyncpa [#allocation4], 0
    %8 = vsyncpa [#allocation6], 0
    // Predicated region
    $region2: #{tpu_custom_call.1} parent=1 // pred_check
      _
    $region3: #{tpu_custom_call.1} parent=1 // pred_check_branch
      %10 = sbr.rel (0) target = $region5
    $region4: #{tpu_custom_call.1} parent=1 // pred_region
      %s12 = ssub.s32 1024, 1024
      %13 = vsyncadd [#allocation4], %s12
      %s14 = sshll.u32 [#allocation3], 4
      %s15 = int_to_ptr.vmem [resolvable:$true] %s14
      %20 = dma.hbm_to_vmem [thread:$0]  %s0, 1024, %s15, [#allocation4], 128, 128, 8
    $region5: #{tpu_custom_call.1} parent=1 // pred_fallthru
      _
    // Predicated region
    $region6: #{tpu_custom_call.1} parent=1 // pred_check
      _
    $region7: #{tpu_custom_call.1} parent=1 // pred_check_branch
      %22 = sbr.rel (0) target = $region9
    $region8: #{tpu_custom_call.1} parent=1 // pred_region
      %s24 = ssub.s32 4992, 4992
      %25 = vsyncadd [#allocation6], %s24
      %s26 = sshll.u32 [#allocation5], 4
      %s27 = int_to_ptr.vmem [resolvable:$true] %s26
      %32 = dma.hbm_to_vmem [thread:$0]  %s1, 4992, %s27, [#allocation6], 128, 128, 8
    $region9: #{tpu_custom_call.1} parent=1 // pred_fallthru
      _
    // Predicated region
    $region10: #{tpu_custom_call.1} parent=1 // pred_check
      _
    $region11: #{tpu_custom_call.1} parent=1 // pred_check_branch
      %34 = sbr.rel (0) target = $region13
    $region12: #{tpu_custom_call.1} parent=1 // pred_region
      %35 = dma.done [#allocation4], 1024
    $region13: #{tpu_custom_call.1} parent=1 // pred_fallthru
      _
    // Predicated region
    $region14: #{tpu_custom_call.1} parent=1 // pred_check
      _
    $region15: #{tpu_custom_call.1} parent=1 // pred_check_branch
      %37 = sbr.rel (0) target = $region17
    $region16: #{tpu_custom_call.1} parent=1 // pred_region
      %38 = dma.done [#allocation6], 4992
    $region17: #{tpu_custom_call.1} parent=1 // pred_fallthru
      _
    %v39 = vld [vmem:[#allocation3] sm:$0xff]
    %v40 = vld [vmem:[#allocation3 + $0x8] sm:$0xff]
    %v41 = vld [vmem:[#allocation3 + $0x10] sm:$0xff]
    %v42 = vld [vmem:[#allocation3 + $0x18] sm:$0xff]
    %v43 = vld [vmem:[#allocation3 + $0x20] sm:$0xff]
    %v44 = vld [vmem:[#allocation3 + $0x28] sm:$0xff]
    %v45 = vld [vmem:[#allocation3 + $0x30] sm:$0xff]
    %v46 = vld [vmem:[#allocation3 + $0x38] sm:$0xff]
    %v47 = vld [vmem:[#allocation5] sm:$0xff]
    %v48 = vld [vmem:[#allocation5 + $0x8] sm:$0xff]
    %v49 = vld [vmem:[#allocation5 + $0x10] sm:$0xff]
    %v50 = vld [vmem:[#allocation5 + $0x18] sm:$0xff]
    %v51 = vld [vmem:[#allocation5 + $0x20] sm:$0xff]
    %v52 = vld [vmem:[#allocation5 + $0x28] sm:$0xff]
    %v53 = vld [vmem:[#allocation5 + $0x30] sm:$0xff]
    %v54 = vld [vmem:[#allocation5 + $0x38] sm:$0xff]
    %v55 = vld [vmem:[#allocation5 + $0x40] sm:$0x1]
    %v56 = vlaneseq
    %v57 = vshrl.u32 %v56, 7
    %v58 = vsub.s32 0, %v57
    %v59 = vrot.slane %v55, %v58
    %vm60 = vcmask 523264
    %v62 = vsel %vm60, %v39, 0
    %v65 = vsel %vm60, %v40, 0
    %v68 = vsel %vm60, %v41, 0
    %v71 = vsel %vm60, %v42, 0
    %v74 = vsel %vm60, %v43, 0
    %v77 = vsel %vm60, %v44, 0
    %v80 = vsel %vm60, %v45, 0
    %v83 = vsel %vm60, %v46, 0
    %85 = vmatprep.subr.mxu0 0.0
    %86 = vmatpush1.msra.mxu0 %v47
    %87 = vmatprep.subr.mxu0 0.0
    %88 = vmatpush1.msra.mxu0 %v48
    %89 = vmatprep.subr.mxu0 0.0
    %90 = vmatpush1.msra.mxu0 %v49
    %91 = vmatprep.subr.mxu0 0.0
    %92 = vmatpush1.msra.mxu0 %v50
    %93 = vmatprep.subr.mxu0 0.0
    %94 = vmatpush1.msra.mxu0 %v51
    %95 = vmatprep.subr.mxu0 0.0
    %96 = vmatpush1.msra.mxu0 %v52
    %97 = vmatprep.subr.mxu0 0.0
    %98 = vmatpush1.msra.mxu0 %v53
    %99 = vmatprep.subr.mxu0 0.0
    %100 = vmatpush1.msra.mxu0 %v54
    %101 = vmatprep.subr.mxu0 0.0
    %102 = vmatpush1.msra.mxu0 0.0
    %103 = vmatprep.subr.mxu0 0.0
    %104 = vmatpush1.msra.mxu0 0.0
    %105 = vmatprep.subr.mxu0 0.0
    %106 = vmatpush1.msra.mxu0 0.0
    %107 = vmatprep.subr.mxu0 0.0
    %108 = vmatpush1.msra.mxu0 0.0
    %109 = vmatprep.subr.mxu0 0.0
    %110 = vmatpush1.msra.mxu0 0.0
    %111 = vmatprep.subr.mxu0 0.0
    %112 = vmatpush1.msra.mxu0 0.0
    %113 = vmatprep.subr.mxu0 0.0
    %114 = vmatpush1.msra.mxu0 0.0
    %115 = vmatprep.subr.mxu0 0.0
    %116 = vmatpush1.msra.mxu0 0.0
    %117 = vmatprep.subr.mxu0 0.0
    %118 = vmatpush1.msra.mxu0 0.0
    %119 = vmatprep.subr.mxu0 0.0
    %120 = vmatpush1.msra.mxu0 0.0
    %121 = vmatprep.subr.mxu0 0.0
    %122 = vmatpush1.msra.mxu0 0.0
    %123 = vmatprep.subr.mxu0 0.0
    %124 = vmatpush1.msra.mxu0 0.0
    %125 = vmatprep.subr.mxu0 0.0
    %126 = vmatpush1.msra.mxu0 0.0
    %127 = vmatprep.subr.mxu0 0.0
    %128 = vmatpush1.msra.mxu0 0.0
    %129 = vmatprep.subr.mxu0 0.0
    %130 = vmatpush1.msra.mxu0 0.0
    %131 = vmatprep.subr.mxu0 0.0
    %132 = vmatpush1.msra.mxu0 0.0
    %133 = vmatprep.subr.mxu0 0.0
    %134 = vmatpush1.msra.mxu0 0.0
    %135 = vmatprep.subr.mxu0 0.0
    %136 = vmatpush1.msra.mxu0 0.0
    %137 = vmatprep.subr.mxu0 0.0
    %138 = vmatpush1.msra.mxu0 0.0
    %139 = vmatprep.subr.mxu0 0.0
    %140 = vmatpush1.msra.mxu0 0.0
    %141 = vmatprep.subr.mxu0 0.0
    %142 = vmatpush1.msra.mxu0 0.0
    %143 = vmatprep.subr.mxu0 0.0
    %144 = vmatpush1.msra.mxu0 0.0
    %145 = vmatprep.subr.mxu0 0.0
    %146 = vmatpush1.msra.mxu0 0.0
    %147 = vmatprep.subr.mxu0 0.0
    %148 = vmatpush1.msra.mxu0 0.0
    %149 = vmatprep.mubr.f32.mxu0 0.0
    %150 = vmatmul.mubr.f32.gmra.mrb[0].mxu0 %v62
    %v151 = vpop.f32.mrb[0].mxu0
    %v152 = vadd.f32 %v59, %v151
    %v153 = vpop.f32.mrb[0].mxu0
    %154 = vmatprep.mubr.f32.mxu0 0.0
    %155 = vmatmul.mubr.f32.gmra.mrb[0].mxu0 %v65
    %v156 = vpop.f32.mrb[0].mxu0
    %v157 = vadd.f32 %v59, %v156
    %v158 = vpop.f32.mrb[0].mxu0
    %159 = vmatprep.mubr.f32.mxu0 0.0
    %160 = vmatmul.mubr.f32.gmra.mrb[0].mxu0 %v68
    %v161 = vpop.f32.mrb[0].mxu0
    %v162 = vadd.f32 %v59, %v161
    %v163 = vpop.f32.mrb[0].mxu0
    %164 = vmatprep.mubr.f32.mxu0 0.0
    %165 = vmatmul.mubr.f32.gmra.mrb[0].mxu0 %v71
    %v166 = vpop.f32.mrb[0].mxu0
    %v167 = vadd.f32 %v59, %v166
    %v168 = vpop.f32.mrb[0].mxu0
    %169 = vmatprep.mubr.f32.mxu0 0.0
    %170 = vmatmul.mubr.f32.gmra.mrb[0].mxu0 %v74
    %v171 = vpop.f32.mrb[0].mxu0
    %v172 = vadd.f32 %v59, %v171
    %v173 = vpop.f32.mrb[0].mxu0
    %174 = vmatprep.mubr.f32.mxu0 0.0
    %175 = vmatmul.mubr.f32.gmra.mrb[0].mxu0 %v77
    %v176 = vpop.f32.mrb[0].mxu0
    %v177 = vadd.f32 %v59, %v176
    %v178 = vpop.f32.mrb[0].mxu0
    %179 = vmatprep.mubr.f32.mxu0 0.0
    %180 = vmatmul.mubr.f32.gmra.mrb[0].mxu0 %v80
    %v181 = vpop.f32.mrb[0].mxu0
    %v182 = vadd.f32 %v59, %v181
    %v183 = vpop.f32.mrb[0].mxu0
    %184 = vmatprep.mubr.f32.mxu0 0.0
    %185 = vmatmul.mubr.f32.gmra.mrb[0].mxu0 %v83
    %v186 = vpop.f32.mrb[0].mxu0
    %v187 = vadd.f32 %v59, %v186
    %v188 = vpop.f32.mrb[0].mxu0
    %189 = vdwg.mxu0
    %v190 = vld [vmem:[#allocation5 + $0x48] sm:$0xff]
    %v191 = vld [vmem:[#allocation5 + $0x50] sm:$0xff]
    %v192 = vld [vmem:[#allocation5 + $0x58] sm:$0xff]
    %v193 = vld [vmem:[#allocation5 + $0x60] sm:$0xff]
    %vm194 = vcmask 523520
    %195 = vst.msk [vmem:[#allocation2] sm:$0xff] %vm194, %v39
    %196 = vst.msk [vmem:[#allocation2 + $0x8] sm:$0xff] %vm194, %v40
    %197 = vst.msk [vmem:[#allocation2 + $0x10] sm:$0xff] %vm194, %v41
    %198 = vst.msk [vmem:[#allocation2 + $0x18] sm:$0xff] %vm194, %v42
    %199 = vst.msk [vmem:[#allocation2 + $0x20] sm:$0xff] %vm194, %v43
    %200 = vst.msk [vmem:[#allocation2 + $0x28] sm:$0xff] %vm194, %v44
    %201 = vst.msk [vmem:[#allocation2 + $0x30] sm:$0xff] %vm194, %v45
    %202 = vst.msk [vmem:[#allocation2 + $0x38] sm:$0xff] %vm194, %v46
    %vm203 = vcmask 261120
    %v205 = vsel %vm203, 0.0, 0
    %207 = vmatprep.subr.mxu0 0.0
    %208 = vmatpush1.msra.mxu0 %v190
    %209 = vmatprep.subr.mxu0 0.0
    %210 = vmatpush1.msra.mxu0 %v191
    %211 = vmatprep.subr.mxu0 0.0
    %212 = vmatpush1.msra.mxu0 %v192
    %213 = vmatprep.subr.mxu0 0.0
    %214 = vmatpush1.msra.mxu0 %v193
    %215 = vmatprep.subr.mxu0 0.0
    %216 = vmatpush1.msra.mxu0 0.0
    %217 = vmatprep.subr.mxu0 0.0
    %218 = vmatpush1.msra.mxu0 0.0
    %219 = vmatprep.subr.mxu0 0.0
    %220 = vmatpush1.msra.mxu0 0.0
    %221 = vmatprep.subr.mxu0 0.0
    %222 = vmatpush1.msra.mxu0 0.0
    %223 = vmatprep.subr.mxu0 0.0
    %224 = vmatpush1.msra.mxu0 0.0
    %225 = vmatprep.subr.mxu0 0.0
    %226 = vmatpush1.msra.mxu0 0.0
    %227 = vmatprep.subr.mxu0 0.0
    %228 = vmatpush1.msra.mxu0 0.0
    %229 = vmatprep.subr.mxu0 0.0
    %230 = vmatpush1.msra.mxu0 0.0
    %231 = vmatprep.subr.mxu0 0.0
    %232 = vmatpush1.msra.mxu0 0.0
    %233 = vmatprep.subr.mxu0 0.0
    %234 = vmatpush1.msra.mxu0 0.0
    %235 = vmatprep.subr.mxu0 0.0
    %236 = vmatpush1.msra.mxu0 0.0
    %237 = vmatprep.subr.mxu0 0.0
    %238 = vmatpush1.msra.mxu0 0.0
    %239 = vmatprep.subr.mxu0 0.0
    %240 = vmatpush1.msra.mxu0 0.0
    %241 = vmatprep.subr.mxu0 0.0
    %242 = vmatpush1.msra.mxu0 0.0
    %243 = vmatprep.subr.mxu0 0.0
    %244 = vmatpush1.msra.mxu0 0.0
    %245 = vmatprep.subr.mxu0 0.0
    %246 = vmatpush1.msra.mxu0 0.0
    %247 = vmatprep.subr.mxu0 0.0
    %248 = vmatpush1.msra.mxu0 0.0
    %249 = vmatprep.subr.mxu0 0.0
    %250 = vmatpush1.msra.mxu0 0.0
    %251 = vmatprep.subr.mxu0 0.0
    %252 = vmatpush1.msra.mxu0 0.0
    %253 = vmatprep.subr.mxu0 0.0
    %254 = vmatpush1.msra.mxu0 0.0
    %255 = vmatprep.subr.mxu0 0.0
    %256 = vmatpush1.msra.mxu0 0.0
    %257 = vmatprep.subr.mxu0 0.0
    %258 = vmatpush1.msra.mxu0 0.0
    %259 = vmatprep.subr.mxu0 0.0
    %260 = vmatpush1.msra.mxu0 0.0
    %261 = vmatprep.subr.mxu0 0.0
    %262 = vmatpush1.msra.mxu0 0.0
    %263 = vmatprep.subr.mxu0 0.0
    %264 = vmatpush1.msra.mxu0 0.0
    %265 = vmatprep.subr.mxu0 0.0
    %266 = vmatpush1.msra.mxu0 0.0
    %267 = vmatprep.subr.mxu0 0.0
    %268 = vmatpush1.msra.mxu0 0.0
    %269 = vmatprep.subr.mxu0 0.0
    %270 = vmatpush1.msra.mxu0 0.0
    %271 = vmatprep.mubr.f32.mxu0 0.0
    %272 = vmatmul.mubr.f32.gmra.mrb[0].mxu0 %v205
    %v273 = vpop.f32.mrb[0].mxu0
    %v274 = vadd.f32 0.0, %v273
    %v275 = vpop.f32.mrb[0].mxu0
    %276 = vdwg.mxu0
    %v277 = vadd.f32 %v152, %v274
    %v278 = vxor.u32 %v277, 2147483648
    %v279 = vmul.f32 %v278, 1.442695
    %v280 = vpow.pop %v279
    %v281 = vadd.f32 %v280, 1.0
    %v282 = vrcp.pop %v281
    %v283 = vmul.f32 1.0, %v282
    %v284 = vtanh.pop %v277
    %v285 = vmul.f32 %v283, 0.0
    %287 = vrot.lane.b32.xlu0 %v284, 64
    %v288 = vpop.permute.xlu0 %287
    %v290 = vmul.f32 %v283, %v288
    %292 = vrot.lane.b32.xlu0 %v290, 32
    %v293 = vpop.permute.xlu0 %292
    %v295 = vadd.f32 %v285, %v293
    %v296 = vtanh.pop %v295
    %298 = vrot.lane.b32.xlu0 %v296, 64
    %v299 = vpop.permute.xlu0 %298
    %v301 = vmul.f32 %v283, %v299
    %303 = vrot.lane.b32.xlu0 %v301, 32
    %v304 = vpop.permute.xlu0 %303
    %vm306 = vcmask 130048
    %307 = vst.msk [vmem:[#allocation2] sm:$0xff] %vm306, %v304
    %vm308 = vcmask 261248
    %309 = vst.msk [vmem:[#allocation2 + $0x38] sm:$0xff] %vm308, %v304
    %v310 = vsel %vm203, %v304, 0
    %312 = vmatprep.subr.mxu0 0.0
    %313 = vmatpush1.msra.mxu0 %v190
    %314 = vmatprep.subr.mxu0 0.0
    %315 = vmatpush1.msra.mxu0 %v191
    %316 = vmatprep.subr.mxu0 0.0
    %317 = vmatpush1.msra.mxu0 %v192
    %318 = vmatprep.subr.mxu0 0.0
    %319 = vmatpush1.msra.mxu0 %v193
    %320 = vmatprep.subr.mxu0 0.0
    %321 = vmatpush1.msra.mxu0 0.0
    %322 = vmatprep.subr.mxu0 0.0
    %323 = vmatpush1.msra.mxu0 0.0
    %324 = vmatprep.subr.mxu0 0.0
    %325 = vmatpush1.msra.mxu0 0.0
    %326 = vmatprep.subr.mxu0 0.0
    %327 = vmatpush1.msra.mxu0 0.0
    %328 = vmatprep.subr.mxu0 0.0
    %329 = vmatpush1.msra.mxu0 0.0
    %330 = vmatprep.subr.mxu0 0.0
    %331 = vmatpush1.msra.mxu0 0.0
    %332 = vmatprep.subr.mxu0 0.0
    %333 = vmatpush1.msra.mxu0 0.0
    %334 = vmatprep.subr.mxu0 0.0
    %335 = vmatpush1.msra.mxu0 0.0
    %336 = vmatprep.subr.mxu0 0.0
    %337 = vmatpush1.msra.mxu0 0.0
    %338 = vmatprep.subr.mxu0 0.0
    %339 = vmatpush1.msra.mxu0 0.0
    %340 = vmatprep.subr.mxu0 0.0
    %341 = vmatpush1.msra.mxu0 0.0
    %342 = vmatprep.subr.mxu0 0.0
    %343 = vmatpush1.msra.mxu0 0.0
    %344 = vmatprep.subr.mxu0 0.0
    %345 = vmatpush1.msra.mxu0 0.0
    %346 = vmatprep.subr.mxu0 0.0
    %347 = vmatpush1.msra.mxu0 0.0
    %348 = vmatprep.subr.mxu0 0.0
    %349 = vmatpush1.msra.mxu0 0.0
    %350 = vmatprep.subr.mxu0 0.0
    %351 = vmatpush1.msra.mxu0 0.0
    %352 = vmatprep.subr.mxu0 0.0
    %353 = vmatpush1.msra.mxu0 0.0
    %354 = vmatprep.subr.mxu0 0.0
    %355 = vmatpush1.msra.mxu0 0.0
    %356 = vmatprep.subr.mxu0 0.0
    %357 = vmatpush1.msra.mxu0 0.0
    %358 = vmatprep.subr.mxu0 0.0
    %359 = vmatpush1.msra.mxu0 0.0
    %360 = vmatprep.subr.mxu0 0.0
    %361 = vmatpush1.msra.mxu0 0.0
    %362 = vmatprep.subr.mxu0 0.0
    %363 = vmatpush1.msra.mxu0 0.0
    %364 = vmatprep.subr.mxu0 0.0
    %365 = vmatpush1.msra.mxu0 0.0
    %366 = vmatprep.subr.mxu0 0.0
    %367 = vmatpush1.msra.mxu0 0.0
    %368 = vmatprep.subr.mxu0 0.0
    %369 = vmatpush1.msra.mxu0 0.0
    %370 = vmatprep.subr.mxu0 0.0
    %371 = vmatpush1.msra.mxu0 0.0
    %372 = vmatprep.subr.mxu0 0.0
    %373 = vmatpush1.msra.mxu0 0.0
    %374 = vmatprep.subr.mxu0 0.0
    %375 = vmatpush1.msra.mxu0 0.0
    %376 = vmatprep.mubr.f32.mxu0 0.0
    %377 = vmatmul.mubr.f32.gmra.mrb[0].mxu0 %v310
    %v378 = vpop.f32.mrb[0].mxu0
    %v379 = vadd.f32 0.0, %v378
    %v380 = vpop.f32.mrb[0].mxu0
    %381 = vdwg.mxu0
    %v382 = vadd.f32 %v157, %v379
    %v383 = vxor.u32 %v382, 2147483648
    %v384 = vmul.f32 %v383, 1.442695
    %v385 = vpow.pop %v384
    %v386 = vadd.f32 %v385, 1.0
    %v387 = vrcp.pop %v386
    %v388 = vmul.f32 1.0, %v387
    %v389 = vtanh.pop %v382
    %v390 = vmul.f32 %v388, %v295
    %392 = vrot.lane.b32.xlu0 %v389, 64
    %v393 = vpop.permute.xlu0 %392
    %v395 = vmul.f32 %v388, %v393
    %397 = vrot.lane.b32.xlu0 %v395, 32
    %v398 = vpop.permute.xlu0 %397
    %v400 = vadd.f32 %v390, %v398
    %v401 = vtanh.pop %v400
    %403 = vrot.lane.b32.xlu0 %v401, 64
    %v404 = vpop.permute.xlu0 %403
    %v406 = vmul.f32 %v388, %v404
    %408 = vrot.lane.b32.xlu0 %v406, 32
    %v409 = vpop.permute.xlu0 %408
    %411 = vst.msk [vmem:[#allocation2 + $0x8] sm:$0xff] %vm306, %v409
    %412 = vst.msk [vmem:[#allocation2 + $0x30] sm:$0xff] %vm308, %v409
    %v413 = vsel %vm203, %v409, 0
    %415 = vmatprep.subr.mxu0 0.0
    %416 = vmatpush1.msra.mxu0 %v190
    %417 = vmatprep.subr.mxu0 0.0
    %418 = vmatpush1.msra.mxu0 %v191
    %419 = vmatprep.subr.mxu0 0.0
    %420 = vmatpush1.msra.mxu0 %v192
    %421 = vmatprep.subr.mxu0 0.0
    %422 = vmatpush1.msra.mxu0 %v193
    %423 = vmatprep.subr.mxu0 0.0
    %424 = vmatpush1.msra.mxu0 0.0
    %425 = vmatprep.subr.mxu0 0.0
    %426 = vmatpush1.msra.mxu0 0.0
    %427 = vmatprep.subr.mxu0 0.0
    %428 = vmatpush1.msra.mxu0 0.0
    %429 = vmatprep.subr.mxu0 0.0
    %430 = vmatpush1.msra.mxu0 0.0
    %431 = vmatprep.subr.mxu0 0.0
    %432 = vmatpush1.msra.mxu0 0.0
    %433 = vmatprep.subr.mxu0 0.0
    %434 = vmatpush1.msra.mxu0 0.0
    %435 = vmatprep.subr.mxu0 0.0
    %436 = vmatpush1.msra.mxu0 0.0
    %437 = vmatprep.subr.mxu0 0.0
    %438 = vmatpush1.msra.mxu0 0.0
    %439 = vmatprep.subr.mxu0 0.0
    %440 = vmatpush1.msra.mxu0 0.0
    %441 = vmatprep.subr.mxu0 0.0
    %442 = vmatpush1.msra.mxu0 0.0
    %443 = vmatprep.subr.mxu0 0.0
    %444 = vmatpush1.msra.mxu0 0.0
    %445 = vmatprep.subr.mxu0 0.0
    %446 = vmatpush1.msra.mxu0 0.0
    %447 = vmatprep.subr.mxu0 0.0
    %448 = vmatpush1.msra.mxu0 0.0
    %449 = vmatprep.subr.mxu0 0.0
    %450 = vmatpush1.msra.mxu0 0.0
    %451 = vmatprep.subr.mxu0 0.0
    %452 = vmatpush1.msra.mxu0 0.0
    %453 = vmatprep.subr.mxu0 0.0
    %454 = vmatpush1.msra.mxu0 0.0
    %455 = vmatprep.subr.mxu0 0.0
    %456 = vmatpush1.msra.mxu0 0.0
    %457 = vmatprep.subr.mxu0 0.0
    %458 = vmatpush1.msra.mxu0 0.0
    %459 = vmatprep.subr.mxu0 0.0
    %460 = vmatpush1.msra.mxu0 0.0
    %461 = vmatprep.subr.mxu0 0.0
    %462 = vmatpush1.msra.mxu0 0.0
    %463 = vmatprep.subr.mxu0 0.0
    %464 = vmatpush1.msra.mxu0 0.0
    %465 = vmatprep.subr.mxu0 0.0
    %466 = vmatpush1.msra.mxu0 0.0
    %467 = vmatprep.subr.mxu0 0.0
    %468 = vmatpush1.msra.mxu0 0.0
    %469 = vmatprep.subr.mxu0 0.0
    %470 = vmatpush1.msra.mxu0 0.0
    %471 = vmatprep.subr.mxu0 0.0
    %472 = vmatpush1.msra.mxu0 0.0
    %473 = vmatprep.subr.mxu0 0.0
    %474 = vmatpush1.msra.mxu0 0.0
    %475 = vmatprep.subr.mxu0 0.0
    %476 = vmatpush1.msra.mxu0 0.0
    %477 = vmatprep.subr.mxu0 0.0
    %478 = vmatpush1.msra.mxu0 0.0
    %479 = vmatprep.mubr.f32.mxu0 0.0
    %480 = vmatmul.mubr.f32.gmra.mrb[0].mxu0 %v413
    %v481 = vpop.f32.mrb[0].mxu0
    %v482 = vadd.f32 0.0, %v481
    %v483 = vpop.f32.mrb[0].mxu0
    %484 = vdwg.mxu0
    %v485 = vadd.f32 %v162, %v482
    %v486 = vxor.u32 %v485, 2147483648
    %v487 = vmul.f32 %v486, 1.442695
    %v488 = vpow.pop %v487
    %v489 = vadd.f32 %v488, 1.0
    %v490 = vrcp.pop %v489
    %v491 = vmul.f32 1.0, %v490
    %v492 = vtanh.pop %v485
    %v493 = vmul.f32 %v491, %v400
    %495 = vrot.lane.b32.xlu0 %v492, 64
    %v496 = vpop.permute.xlu0 %495
    %v498 = vmul.f32 %v491, %v496
    %500 = vrot.lane.b32.xlu0 %v498, 32
    %v501 = vpop.permute.xlu0 %500
    %v503 = vadd.f32 %v493, %v501
    %v504 = vtanh.pop %v503
    %506 = vrot.lane.b32.xlu0 %v504, 64
    %v507 = vpop.permute.xlu0 %506
    %v509 = vmul.f32 %v491, %v507
    %511 = vrot.lane.b32.xlu0 %v509, 32
    %v512 = vpop.permute.xlu0 %511
    %514 = vst.msk [vmem:[#allocation2 + $0x10] sm:$0xff] %vm306, %v512
    %515 = vst.msk [vmem:[#allocation2 + $0x28] sm:$0xff] %vm308, %v512
    %v516 = vsel %vm203, %v512, 0
    %518 = vmatprep.subr.mxu0 0.0
    %519 = vmatpush1.msra.mxu0 %v190
    %520 = vmatprep.subr.mxu0 0.0
    %521 = vmatpush1.msra.mxu0 %v191
    %522 = vmatprep.subr.mxu0 0.0
    %523 = vmatpush1.msra.mxu0 %v192
    %524 = vmatprep.subr.mxu0 0.0
    %525 = vmatpush1.msra.mxu0 %v193
    %526 = vmatprep.subr.mxu0 0.0
    %527 = vmatpush1.msra.mxu0 0.0
    %528 = vmatprep.subr.mxu0 0.0
    %529 = vmatpush1.msra.mxu0 0.0
    %530 = vmatprep.subr.mxu0 0.0
    %531 = vmatpush1.msra.mxu0 0.0
    %532 = vmatprep.subr.mxu0 0.0
    %533 = vmatpush1.msra.mxu0 0.0
    %534 = vmatprep.subr.mxu0 0.0
    %535 = vmatpush1.msra.mxu0 0.0
    %536 = vmatprep.subr.mxu0 0.0
    %537 = vmatpush1.msra.mxu0 0.0
    %538 = vmatprep.subr.mxu0 0.0
    %539 = vmatpush1.msra.mxu0 0.0
    %540 = vmatprep.subr.mxu0 0.0
    %541 = vmatpush1.msra.mxu0 0.0
    %542 = vmatprep.subr.mxu0 0.0
    %543 = vmatpush1.msra.mxu0 0.0
    %544 = vmatprep.subr.mxu0 0.0
    %545 = vmatpush1.msra.mxu0 0.0
    %546 = vmatprep.subr.mxu0 0.0
    %547 = vmatpush1.msra.mxu0 0.0
    %548 = vmatprep.subr.mxu0 0.0
    %549 = vmatpush1.msra.mxu0 0.0
    %550 = vmatprep.subr.mxu0 0.0
    %551 = vmatpush1.msra.mxu0 0.0
    %552 = vmatprep.subr.mxu0 0.0
    %553 = vmatpush1.msra.mxu0 0.0
    %554 = vmatprep.subr.mxu0 0.0
    %555 = vmatpush1.msra.mxu0 0.0
    %556 = vmatprep.subr.mxu0 0.0
    %557 = vmatpush1.msra.mxu0 0.0
    %558 = vmatprep.subr.mxu0 0.0
    %559 = vmatpush1.msra.mxu0 0.0
    %560 = vmatprep.subr.mxu0 0.0
    %561 = vmatpush1.msra.mxu0 0.0
    %562 = vmatprep.subr.mxu0 0.0
    %563 = vmatpush1.msra.mxu0 0.0
    %564 = vmatprep.subr.mxu0 0.0
    %565 = vmatpush1.msra.mxu0 0.0
    %566 = vmatprep.subr.mxu0 0.0
    %567 = vmatpush1.msra.mxu0 0.0
    %568 = vmatprep.subr.mxu0 0.0
    %569 = vmatpush1.msra.mxu0 0.0
    %570 = vmatprep.subr.mxu0 0.0
    %571 = vmatpush1.msra.mxu0 0.0
    %572 = vmatprep.subr.mxu0 0.0
    %573 = vmatpush1.msra.mxu0 0.0
    %574 = vmatprep.subr.mxu0 0.0
    %575 = vmatpush1.msra.mxu0 0.0
    %576 = vmatprep.subr.mxu0 0.0
    %577 = vmatpush1.msra.mxu0 0.0
    %578 = vmatprep.subr.mxu0 0.0
    %579 = vmatpush1.msra.mxu0 0.0
    %580 = vmatprep.subr.mxu0 0.0
    %581 = vmatpush1.msra.mxu0 0.0
    %582 = vmatprep.mubr.f32.mxu0 0.0
    %583 = vmatmul.mubr.f32.gmra.mrb[0].mxu0 %v516
    %v584 = vpop.f32.mrb[0].mxu0
    %v585 = vadd.f32 0.0, %v584
    %v586 = vpop.f32.mrb[0].mxu0
    %587 = vdwg.mxu0
    %v588 = vadd.f32 %v167, %v585
    %v589 = vxor.u32 %v588, 2147483648
    %v590 = vmul.f32 %v589, 1.442695
    %v591 = vpow.pop %v590
    %v592 = vadd.f32 %v591, 1.0
    %v593 = vrcp.pop %v592
    %v594 = vmul.f32 1.0, %v593
    %v595 = vtanh.pop %v588
    %v596 = vmul.f32 %v594, %v503
    %598 = vrot.lane.b32.xlu0 %v595, 64
    %v599 = vpop.permute.xlu0 %598
    %v601 = vmul.f32 %v594, %v599
    %603 = vrot.lane.b32.xlu0 %v601, 32
    %v604 = vpop.permute.xlu0 %603
    %v606 = vadd.f32 %v596, %v604
    %v607 = vtanh.pop %v606
    %609 = vrot.lane.b32.xlu0 %v607, 64
    %v610 = vpop.permute.xlu0 %609
    %v612 = vmul.f32 %v594, %v610
    %614 = vrot.lane.b32.xlu0 %v612, 32
    %v615 = vpop.permute.xlu0 %614
    %617 = vst.msk [vmem:[#allocation2 + $0x18] sm:$0xff] %vm306, %v615
    %618 = vst.msk [vmem:[#allocation2 + $0x20] sm:$0xff] %vm308, %v615
    %v619 = vsel %vm203, %v615, 0
    %621 = vmatprep.subr.mxu0 0.0
    %622 = vmatpush1.msra.mxu0 %v190
    %623 = vmatprep.subr.mxu0 0.0
    %624 = vmatpush1.msra.mxu0 %v191
    %625 = vmatprep.subr.mxu0 0.0
    %626 = vmatpush1.msra.mxu0 %v192
    %627 = vmatprep.subr.mxu0 0.0
    %628 = vmatpush1.msra.mxu0 %v193
    %629 = vmatprep.subr.mxu0 0.0
    %630 = vmatpush1.msra.mxu0 0.0
    %631 = vmatprep.subr.mxu0 0.0
    %632 = vmatpush1.msra.mxu0 0.0
    %633 = vmatprep.subr.mxu0 0.0
    %634 = vmatpush1.msra.mxu0 0.0
    %635 = vmatprep.subr.mxu0 0.0
    %636 = vmatpush1.msra.mxu0 0.0
    %637 = vmatprep.subr.mxu0 0.0
    %638 = vmatpush1.msra.mxu0 0.0
    %639 = vmatprep.subr.mxu0 0.0
    %640 = vmatpush1.msra.mxu0 0.0
    %641 = vmatprep.subr.mxu0 0.0
    %642 = vmatpush1.msra.mxu0 0.0
    %643 = vmatprep.subr.mxu0 0.0
    %644 = vmatpush1.msra.mxu0 0.0
    %645 = vmatprep.subr.mxu0 0.0
    %646 = vmatpush1.msra.mxu0 0.0
    %647 = vmatprep.subr.mxu0 0.0
    %648 = vmatpush1.msra.mxu0 0.0
    %649 = vmatprep.subr.mxu0 0.0
    %650 = vmatpush1.msra.mxu0 0.0
    %651 = vmatprep.subr.mxu0 0.0
    %652 = vmatpush1.msra.mxu0 0.0
    %653 = vmatprep.subr.mxu0 0.0
    %654 = vmatpush1.msra.mxu0 0.0
    %655 = vmatprep.subr.mxu0 0.0
    %656 = vmatpush1.msra.mxu0 0.0
    %657 = vmatprep.subr.mxu0 0.0
    %658 = vmatpush1.msra.mxu0 0.0
    %659 = vmatprep.subr.mxu0 0.0
    %660 = vmatpush1.msra.mxu0 0.0
    %661 = vmatprep.subr.mxu0 0.0
    %662 = vmatpush1.msra.mxu0 0.0
    %663 = vmatprep.subr.mxu0 0.0
    %664 = vmatpush1.msra.mxu0 0.0
    %665 = vmatprep.subr.mxu0 0.0
    %666 = vmatpush1.msra.mxu0 0.0
    %667 = vmatprep.subr.mxu0 0.0
    %668 = vmatpush1.msra.mxu0 0.0
    %669 = vmatprep.subr.mxu0 0.0
    %670 = vmatpush1.msra.mxu0 0.0
    %671 = vmatprep.subr.mxu0 0.0
    %672 = vmatpush1.msra.mxu0 0.0
    %673 = vmatprep.subr.mxu0 0.0
    %674 = vmatpush1.msra.mxu0 0.0
    %675 = vmatprep.subr.mxu0 0.0
    %676 = vmatpush1.msra.mxu0 0.0
    %677 = vmatprep.subr.mxu0 0.0
    %678 = vmatpush1.msra.mxu0 0.0
    %679 = vmatprep.subr.mxu0 0.0
    %680 = vmatpush1.msra.mxu0 0.0
    %681 = vmatprep.subr.mxu0 0.0
    %682 = vmatpush1.msra.mxu0 0.0
    %683 = vmatprep.subr.mxu0 0.0
    %684 = vmatpush1.msra.mxu0 0.0
    %685 = vmatprep.mubr.f32.mxu0 0.0
    %686 = vmatmul.mubr.f32.gmra.mrb[0].mxu0 %v619
    %v687 = vpop.f32.mrb[0].mxu0
    %v688 = vadd.f32 0.0, %v687
    %v689 = vpop.f32.mrb[0].mxu0
    %690 = vdwg.mxu0
    %v691 = vadd.f32 %v172, %v688
    %v692 = vxor.u32 %v691, 2147483648
    %v693 = vmul.f32 %v692, 1.442695
    %v694 = vpow.pop %v693
    %v695 = vadd.f32 %v694, 1.0
    %v696 = vrcp.pop %v695
    %v697 = vmul.f32 1.0, %v696
    %v698 = vtanh.pop %v691
    %v699 = vmul.f32 %v697, %v606
    %701 = vrot.lane.b32.xlu0 %v698, 64
    %v702 = vpop.permute.xlu0 %701
    %v704 = vmul.f32 %v697, %v702
    %706 = vrot.lane.b32.xlu0 %v704, 32
    %v707 = vpop.permute.xlu0 %706
    %v709 = vadd.f32 %v699, %v707
    %v710 = vtanh.pop %v709
    %712 = vrot.lane.b32.xlu0 %v710, 64
    %v713 = vpop.permute.xlu0 %712
    %v715 = vmul.f32 %v697, %v713
    %717 = vrot.lane.b32.xlu0 %v715, 32
    %v718 = vpop.permute.xlu0 %717
    %720 = vst.msk [vmem:[#allocation2 + $0x20] sm:$0xff] %vm306, %v718
    %721 = vst.msk [vmem:[#allocation2 + $0x18] sm:$0xff] %vm308, %v718
    %v722 = vsel %vm203, %v718, 0
    %724 = vmatprep.subr.mxu0 0.0
    %725 = vmatpush1.msra.mxu0 %v190
    %726 = vmatprep.subr.mxu0 0.0
    %727 = vmatpush1.msra.mxu0 %v191
    %728 = vmatprep.subr.mxu0 0.0
    %729 = vmatpush1.msra.mxu0 %v192
    %730 = vmatprep.subr.mxu0 0.0
    %731 = vmatpush1.msra.mxu0 %v193
    %732 = vmatprep.subr.mxu0 0.0
    %733 = vmatpush1.msra.mxu0 0.0
    %734 = vmatprep.subr.mxu0 0.0
    %735 = vmatpush1.msra.mxu0 0.0
    %736 = vmatprep.subr.mxu0 0.0
    %737 = vmatpush1.msra.mxu0 0.0
    %738 = vmatprep.subr.mxu0 0.0
    %739 = vmatpush1.msra.mxu0 0.0
    %740 = vmatprep.subr.mxu0 0.0
    %741 = vmatpush1.msra.mxu0 0.0
    %742 = vmatprep.subr.mxu0 0.0
    %743 = vmatpush1.msra.mxu0 0.0
    %744 = vmatprep.subr.mxu0 0.0
    %745 = vmatpush1.msra.mxu0 0.0
    %746 = vmatprep.subr.mxu0 0.0
    %747 = vmatpush1.msra.mxu0 0.0
    %748 = vmatprep.subr.mxu0 0.0
    %749 = vmatpush1.msra.mxu0 0.0
    %750 = vmatprep.subr.mxu0 0.0
    %751 = vmatpush1.msra.mxu0 0.0
    %752 = vmatprep.subr.mxu0 0.0
    %753 = vmatpush1.msra.mxu0 0.0
    %754 = vmatprep.subr.mxu0 0.0
    %755 = vmatpush1.msra.mxu0 0.0
    %756 = vmatprep.subr.mxu0 0.0
    %757 = vmatpush1.msra.mxu0 0.0
    %758 = vmatprep.subr.mxu0 0.0
    %759 = vmatpush1.msra.mxu0 0.0
    %760 = vmatprep.subr.mxu0 0.0
    %761 = vmatpush1.msra.mxu0 0.0
    %762 = vmatprep.subr.mxu0 0.0
    %763 = vmatpush1.msra.mxu0 0.0
    %764 = vmatprep.subr.mxu0 0.0
    %765 = vmatpush1.msra.mxu0 0.0
    %766 = vmatprep.subr.mxu0 0.0
    %767 = vmatpush1.msra.mxu0 0.0
    %768 = vmatprep.subr.mxu0 0.0
    %769 = vmatpush1.msra.mxu0 0.0
    %770 = vmatprep.subr.mxu0 0.0
    %771 = vmatpush1.msra.mxu0 0.0
    %772 = vmatprep.subr.mxu0 0.0
    %773 = vmatpush1.msra.mxu0 0.0
    %774 = vmatprep.subr.mxu0 0.0
    %775 = vmatpush1.msra.mxu0 0.0
    %776 = vmatprep.subr.mxu0 0.0
    %777 = vmatpush1.msra.mxu0 0.0
    %778 = vmatprep.subr.mxu0 0.0
    %779 = vmatpush1.msra.mxu0 0.0
    %780 = vmatprep.subr.mxu0 0.0
    %781 = vmatpush1.msra.mxu0 0.0
    %782 = vmatprep.subr.mxu0 0.0
    %783 = vmatpush1.msra.mxu0 0.0
    %784 = vmatprep.subr.mxu0 0.0
    %785 = vmatpush1.msra.mxu0 0.0
    %786 = vmatprep.subr.mxu0 0.0
    %787 = vmatpush1.msra.mxu0 0.0
    %788 = vmatprep.mubr.f32.mxu0 0.0
    %789 = vmatmul.mubr.f32.gmra.mrb[0].mxu0 %v722
    %v790 = vpop.f32.mrb[0].mxu0
    %v791 = vadd.f32 0.0, %v790
    %v792 = vpop.f32.mrb[0].mxu0
    %793 = vdwg.mxu0
    %v794 = vadd.f32 %v177, %v791
    %v795 = vxor.u32 %v794, 2147483648
    %v796 = vmul.f32 %v795, 1.442695
    %v797 = vpow.pop %v796
    %v798 = vadd.f32 %v797, 1.0
    %v799 = vrcp.pop %v798
    %v800 = vmul.f32 1.0, %v799
    %v801 = vtanh.pop %v794
    %v802 = vmul.f32 %v800, %v709
    %804 = vrot.lane.b32.xlu0 %v801, 64
    %v805 = vpop.permute.xlu0 %804
    %v807 = vmul.f32 %v800, %v805
    %809 = vrot.lane.b32.xlu0 %v807, 32
    %v810 = vpop.permute.xlu0 %809
    %v812 = vadd.f32 %v802, %v810
    %v813 = vtanh.pop %v812
    %815 = vrot.lane.b32.xlu0 %v813, 64
    %v816 = vpop.permute.xlu0 %815
    %v818 = vmul.f32 %v800, %v816
    %820 = vrot.lane.b32.xlu0 %v818, 32
    %v821 = vpop.permute.xlu0 %820
    %823 = vst.msk [vmem:[#allocation2 + $0x28] sm:$0xff] %vm306, %v821
    %824 = vst.msk [vmem:[#allocation2 + $0x10] sm:$0xff] %vm308, %v821
    %v825 = vsel %vm203, %v821, 0
    %827 = vmatprep.subr.mxu0 0.0
    %828 = vmatpush1.msra.mxu0 %v190
    %829 = vmatprep.subr.mxu0 0.0
    %830 = vmatpush1.msra.mxu0 %v191
    %831 = vmatprep.subr.mxu0 0.0
    %832 = vmatpush1.msra.mxu0 %v192
    %833 = vmatprep.subr.mxu0 0.0
    %834 = vmatpush1.msra.mxu0 %v193
    %835 = vmatprep.subr.mxu0 0.0
    %836 = vmatpush1.msra.mxu0 0.0
    %837 = vmatprep.subr.mxu0 0.0
    %838 = vmatpush1.msra.mxu0 0.0
    %839 = vmatprep.subr.mxu0 0.0
    %840 = vmatpush1.msra.mxu0 0.0
    %841 = vmatprep.subr.mxu0 0.0
    %842 = vmatpush1.msra.mxu0 0.0
    %843 = vmatprep.subr.mxu0 0.0
    %844 = vmatpush1.msra.mxu0 0.0
    %845 = vmatprep.subr.mxu0 0.0
    %846 = vmatpush1.msra.mxu0 0.0
    %847 = vmatprep.subr.mxu0 0.0
    %848 = vmatpush1.msra.mxu0 0.0
    %849 = vmatprep.subr.mxu0 0.0
    %850 = vmatpush1.msra.mxu0 0.0
    %851 = vmatprep.subr.mxu0 0.0
    %852 = vmatpush1.msra.mxu0 0.0
    %853 = vmatprep.subr.mxu0 0.0
    %854 = vmatpush1.msra.mxu0 0.0
    %855 = vmatprep.subr.mxu0 0.0
    %856 = vmatpush1.msra.mxu0 0.0
    %857 = vmatprep.subr.mxu0 0.0
    %858 = vmatpush1.msra.mxu0 0.0
    %859 = vmatprep.subr.mxu0 0.0
    %860 = vmatpush1.msra.mxu0 0.0
    %861 = vmatprep.subr.mxu0 0.0
    %862 = vmatpush1.msra.mxu0 0.0
    %863 = vmatprep.subr.mxu0 0.0
    %864 = vmatpush1.msra.mxu0 0.0
    %865 = vmatprep.subr.mxu0 0.0
    %866 = vmatpush1.msra.mxu0 0.0
    %867 = vmatprep.subr.mxu0 0.0
    %868 = vmatpush1.msra.mxu0 0.0
    %869 = vmatprep.subr.mxu0 0.0
    %870 = vmatpush1.msra.mxu0 0.0
    %871 = vmatprep.subr.mxu0 0.0
    %872 = vmatpush1.msra.mxu0 0.0
    %873 = vmatprep.subr.mxu0 0.0
    %874 = vmatpush1.msra.mxu0 0.0
    %875 = vmatprep.subr.mxu0 0.0
    %876 = vmatpush1.msra.mxu0 0.0
    %877 = vmatprep.subr.mxu0 0.0
    %878 = vmatpush1.msra.mxu0 0.0
    %879 = vmatprep.subr.mxu0 0.0
    %880 = vmatpush1.msra.mxu0 0.0
    %881 = vmatprep.subr.mxu0 0.0
    %882 = vmatpush1.msra.mxu0 0.0
    %883 = vmatprep.subr.mxu0 0.0
    %884 = vmatpush1.msra.mxu0 0.0
    %885 = vmatprep.subr.mxu0 0.0
    %886 = vmatpush1.msra.mxu0 0.0
    %887 = vmatprep.subr.mxu0 0.0
    %888 = vmatpush1.msra.mxu0 0.0
    %889 = vmatprep.subr.mxu0 0.0
    %890 = vmatpush1.msra.mxu0 0.0
    %891 = vmatprep.mubr.f32.mxu0 0.0
    %892 = vmatmul.mubr.f32.gmra.mrb[0].mxu0 %v825
    %v893 = vpop.f32.mrb[0].mxu0
    %v894 = vadd.f32 0.0, %v893
    %v895 = vpop.f32.mrb[0].mxu0
    %896 = vdwg.mxu0
    %v897 = vadd.f32 %v182, %v894
    %v898 = vxor.u32 %v897, 2147483648
    %v899 = vmul.f32 %v898, 1.442695
    %v900 = vpow.pop %v899
    %v901 = vadd.f32 %v900, 1.0
    %v902 = vrcp.pop %v901
    %v903 = vmul.f32 1.0, %v902
    %v904 = vtanh.pop %v897
    %v905 = vmul.f32 %v903, %v812
    %907 = vrot.lane.b32.xlu0 %v904, 64
    %v908 = vpop.permute.xlu0 %907
    %v910 = vmul.f32 %v903, %v908
    %912 = vrot.lane.b32.xlu0 %v910, 32
    %v913 = vpop.permute.xlu0 %912
    %v915 = vadd.f32 %v905, %v913
    %v916 = vtanh.pop %v915
    %918 = vrot.lane.b32.xlu0 %v916, 64
    %v919 = vpop.permute.xlu0 %918
    %v921 = vmul.f32 %v903, %v919
    %923 = vrot.lane.b32.xlu0 %v921, 32
    %v924 = vpop.permute.xlu0 %923
    %926 = vst.msk [vmem:[#allocation2 + $0x30] sm:$0xff] %vm306, %v924
    %927 = vst.msk [vmem:[#allocation2 + $0x8] sm:$0xff] %vm308, %v924
    %v928 = vsel %vm203, %v924, 0
    %930 = vmatprep.subr.mxu0 0.0
    %931 = vmatpush1.msra.mxu0 %v190
    %932 = vmatprep.subr.mxu0 0.0
    %933 = vmatpush1.msra.mxu0 %v191
    %934 = vmatprep.subr.mxu0 0.0
    %935 = vmatpush1.msra.mxu0 %v192
    %936 = vmatprep.subr.mxu0 0.0
    %937 = vmatpush1.msra.mxu0 %v193
    %938 = vmatprep.subr.mxu0 0.0
    %939 = vmatpush1.msra.mxu0 0.0
    %940 = vmatprep.subr.mxu0 0.0
    %941 = vmatpush1.msra.mxu0 0.0
    %942 = vmatprep.subr.mxu0 0.0
    %943 = vmatpush1.msra.mxu0 0.0
    %944 = vmatprep.subr.mxu0 0.0
    %945 = vmatpush1.msra.mxu0 0.0
    %946 = vmatprep.subr.mxu0 0.0
    %947 = vmatpush1.msra.mxu0 0.0
    %948 = vmatprep.subr.mxu0 0.0
    %949 = vmatpush1.msra.mxu0 0.0
    %950 = vmatprep.subr.mxu0 0.0
    %951 = vmatpush1.msra.mxu0 0.0
    %952 = vmatprep.subr.mxu0 0.0
    %953 = vmatpush1.msra.mxu0 0.0
    %954 = vmatprep.subr.mxu0 0.0
    %955 = vmatpush1.msra.mxu0 0.0
    %956 = vmatprep.subr.mxu0 0.0
    %957 = vmatpush1.msra.mxu0 0.0
    %958 = vmatprep.subr.mxu0 0.0
    %959 = vmatpush1.msra.mxu0 0.0
    %960 = vmatprep.subr.mxu0 0.0
    %961 = vmatpush1.msra.mxu0 0.0
    %962 = vmatprep.subr.mxu0 0.0
    %963 = vmatpush1.msra.mxu0 0.0
    %964 = vmatprep.subr.mxu0 0.0
    %965 = vmatpush1.msra.mxu0 0.0
    %966 = vmatprep.subr.mxu0 0.0
    %967 = vmatpush1.msra.mxu0 0.0
    %968 = vmatprep.subr.mxu0 0.0
    %969 = vmatpush1.msra.mxu0 0.0
    %970 = vmatprep.subr.mxu0 0.0
    %971 = vmatpush1.msra.mxu0 0.0
    %972 = vmatprep.subr.mxu0 0.0
    %973 = vmatpush1.msra.mxu0 0.0
    %974 = vmatprep.subr.mxu0 0.0
    %975 = vmatpush1.msra.mxu0 0.0
    %976 = vmatprep.subr.mxu0 0.0
    %977 = vmatpush1.msra.mxu0 0.0
    %978 = vmatprep.subr.mxu0 0.0
    %979 = vmatpush1.msra.mxu0 0.0
    %980 = vmatprep.subr.mxu0 0.0
    %981 = vmatpush1.msra.mxu0 0.0
    %982 = vmatprep.subr.mxu0 0.0
    %983 = vmatpush1.msra.mxu0 0.0
    %984 = vmatprep.subr.mxu0 0.0
    %985 = vmatpush1.msra.mxu0 0.0
    %986 = vmatprep.subr.mxu0 0.0
    %987 = vmatpush1.msra.mxu0 0.0
    %988 = vmatprep.subr.mxu0 0.0
    %989 = vmatpush1.msra.mxu0 0.0
    %990 = vmatprep.subr.mxu0 0.0
    %991 = vmatpush1.msra.mxu0 0.0
    %992 = vmatprep.subr.mxu0 0.0
    %993 = vmatpush1.msra.mxu0 0.0
    %994 = vmatprep.mubr.f32.mxu0 0.0
    %995 = vmatmul.mubr.f32.gmra.mrb[0].mxu0 %v928
    %v996 = vpop.f32.mrb[0].mxu0
    %v997 = vadd.f32 0.0, %v996
    %v998 = vpop.f32.mrb[0].mxu0
    %999 = vdwg.mxu0
    %v1000 = vadd.f32 %v187, %v997
    %v1001 = vxor.u32 %v1000, 2147483648
    %v1002 = vmul.f32 %v1001, 1.442695
    %v1003 = vpow.pop %v1002
    %v1004 = vadd.f32 %v1003, 1.0
    %v1005 = vrcp.pop %v1004
    %v1006 = vmul.f32 1.0, %v1005
    %v1007 = vtanh.pop %v1000
    %v1008 = vmul.f32 %v1006, %v915
    %1010 = vrot.lane.b32.xlu0 %v1007, 64
    %v1011 = vpop.permute.xlu0 %1010
    %v1013 = vmul.f32 %v1006, %v1011
    %1015 = vrot.lane.b32.xlu0 %v1013, 32
    %v1016 = vpop.permute.xlu0 %1015
    %v1018 = vadd.f32 %v1008, %v1016
    %v1019 = vtanh.pop %v1018
    %1021 = vrot.lane.b32.xlu0 %v1019, 64
    %v1022 = vpop.permute.xlu0 %1021
    %v1024 = vmul.f32 %v1006, %v1022
    %1026 = vrot.lane.b32.xlu0 %v1024, 32
    %v1027 = vpop.permute.xlu0 %1026
    %1029 = vst.msk [vmem:[#allocation2 + $0x38] sm:$0xff] %vm306, %v1027
    %1030 = vst.msk [vmem:[#allocation2] sm:$0xff] %vm308, %v1027
    %v1031 = vld [vmem:[#allocation2] sm:$0xff]
    %v1032 = vld [vmem:[#allocation2 + $0x8] sm:$0xff]
    %v1033 = vld [vmem:[#allocation2 + $0x10] sm:$0xff]
    %v1034 = vld [vmem:[#allocation2 + $0x18] sm:$0xff]
    %v1035 = vld [vmem:[#allocation2 + $0x20] sm:$0xff]
    %v1036 = vld [vmem:[#allocation2 + $0x28] sm:$0xff]
    %v1037 = vld [vmem:[#allocation2 + $0x30] sm:$0xff]
    %v1038 = vld [vmem:[#allocation2 + $0x38] sm:$0xff]
    %v1039 = vld [vmem:[#allocation5 + $0x68] sm:$0xff]
    %v1040 = vld [vmem:[#allocation5 + $0x70] sm:$0xff]
    %v1041 = vld [vmem:[#allocation5 + $0x78] sm:$0xff]
    %v1042 = vld [vmem:[#allocation5 + $0x80] sm:$0xff]
    %v1043 = vld [vmem:[#allocation5 + $0x88] sm:$0xff]
    %v1044 = vld [vmem:[#allocation5 + $0x90] sm:$0xff]
    %v1045 = vld [vmem:[#allocation5 + $0x98] sm:$0xff]
    %v1046 = vld [vmem:[#allocation5 + $0xa0] sm:$0xff]
    %v1047 = vld [vmem:[#allocation5 + $0xa8] sm:$0x1]
    %v1048 = vlaneseq
    %v1049 = vshrl.u32 %v1048, 7
    %v1050 = vsub.s32 0, %v1049
    %v1051 = vrot.slane %v1047, %v1050
    %v1053 = vsel %vm60, %v1031, 0
    %v1056 = vsel %vm60, %v1032, 0
    %v1059 = vsel %vm60, %v1033, 0
    %v1062 = vsel %vm60, %v1034, 0
    %v1065 = vsel %vm60, %v1035, 0
    %v1068 = vsel %vm60, %v1036, 0
    %v1071 = vsel %vm60, %v1037, 0
    %v1074 = vsel %vm60, %v1038, 0
    %1076 = vmatprep.subr.mxu0 0.0
    %1077 = vmatpush1.msra.mxu0 %v1039
    %1078 = vmatprep.subr.mxu0 0.0
    %1079 = vmatpush1.msra.mxu0 %v1040
    %1080 = vmatprep.subr.mxu0 0.0
    %1081 = vmatpush1.msra.mxu0 %v1041
    %1082 = vmatprep.subr.mxu0 0.0
    %1083 = vmatpush1.msra.mxu0 %v1042
    %1084 = vmatprep.subr.mxu0 0.0
    %1085 = vmatpush1.msra.mxu0 %v1043
    %1086 = vmatprep.subr.mxu0 0.0
    %1087 = vmatpush1.msra.mxu0 %v1044
    %1088 = vmatprep.subr.mxu0 0.0
    %1089 = vmatpush1.msra.mxu0 %v1045
    %1090 = vmatprep.subr.mxu0 0.0
    %1091 = vmatpush1.msra.mxu0 %v1046
    %1092 = vmatprep.subr.mxu0 0.0
    %1093 = vmatpush1.msra.mxu0 0.0
    %1094 = vmatprep.subr.mxu0 0.0
    %1095 = vmatpush1.msra.mxu0 0.0
    %1096 = vmatprep.subr.mxu0 0.0
    %1097 = vmatpush1.msra.mxu0 0.0
    %1098 = vmatprep.subr.mxu0 0.0
    %1099 = vmatpush1.msra.mxu0 0.0
    %1100 = vmatprep.subr.mxu0 0.0
    %1101 = vmatpush1.msra.mxu0 0.0
    %1102 = vmatprep.subr.mxu0 0.0
    %1103 = vmatpush1.msra.mxu0 0.0
    %1104 = vmatprep.subr.mxu0 0.0
    %1105 = vmatpush1.msra.mxu0 0.0
    %1106 = vmatprep.subr.mxu0 0.0
    %1107 = vmatpush1.msra.mxu0 0.0
    %1108 = vmatprep.subr.mxu0 0.0
    %1109 = vmatpush1.msra.mxu0 0.0
    %1110 = vmatprep.subr.mxu0 0.0
    %1111 = vmatpush1.msra.mxu0 0.0
    %1112 = vmatprep.subr.mxu0 0.0
    %1113 = vmatpush1.msra.mxu0 0.0
    %1114 = vmatprep.subr.mxu0 0.0
    %1115 = vmatpush1.msra.mxu0 0.0
    %1116 = vmatprep.subr.mxu0 0.0
    %1117 = vmatpush1.msra.mxu0 0.0
    %1118 = vmatprep.subr.mxu0 0.0
    %1119 = vmatpush1.msra.mxu0 0.0
    %1120 = vmatprep.subr.mxu0 0.0
    %1121 = vmatpush1.msra.mxu0 0.0
    %1122 = vmatprep.subr.mxu0 0.0
    %1123 = vmatpush1.msra.mxu0 0.0
    %1124 = vmatprep.subr.mxu0 0.0
    %1125 = vmatpush1.msra.mxu0 0.0
    %1126 = vmatprep.subr.mxu0 0.0
    %1127 = vmatpush1.msra.mxu0 0.0
    %1128 = vmatprep.subr.mxu0 0.0
    %1129 = vmatpush1.msra.mxu0 0.0
    %1130 = vmatprep.subr.mxu0 0.0
    %1131 = vmatpush1.msra.mxu0 0.0
    %1132 = vmatprep.subr.mxu0 0.0
    %1133 = vmatpush1.msra.mxu0 0.0
    %1134 = vmatprep.subr.mxu0 0.0
    %1135 = vmatpush1.msra.mxu0 0.0
    %1136 = vmatprep.subr.mxu0 0.0
    %1137 = vmatpush1.msra.mxu0 0.0
    %1138 = vmatprep.subr.mxu0 0.0
    %1139 = vmatpush1.msra.mxu0 0.0
    %1140 = vmatprep.mubr.f32.mxu0 0.0
    %1141 = vmatmul.mubr.f32.gmra.mrb[0].mxu0 %v1053
    %v1142 = vpop.f32.mrb[0].mxu0
    %v1143 = vadd.f32 %v1051, %v1142
    %v1144 = vpop.f32.mrb[0].mxu0
    %1145 = vmatprep.mubr.f32.mxu0 0.0
    %1146 = vmatmul.mubr.f32.gmra.mrb[0].mxu0 %v1056
    %v1147 = vpop.f32.mrb[0].mxu0
    %v1148 = vadd.f32 %v1051, %v1147
    %v1149 = vpop.f32.mrb[0].mxu0
    %1150 = vmatprep.mubr.f32.mxu0 0.0
    %1151 = vmatmul.mubr.f32.gmra.mrb[0].mxu0 %v1059
    %v1152 = vpop.f32.mrb[0].mxu0
    %v1153 = vadd.f32 %v1051, %v1152
    %v1154 = vpop.f32.mrb[0].mxu0
    %1155 = vmatprep.mubr.f32.mxu0 0.0
    %1156 = vmatmul.mubr.f32.gmra.mrb[0].mxu0 %v1062
    %v1157 = vpop.f32.mrb[0].mxu0
    %v1158 = vadd.f32 %v1051, %v1157
    %v1159 = vpop.f32.mrb[0].mxu0
    %1160 = vmatprep.mubr.f32.mxu0 0.0
    %1161 = vmatmul.mubr.f32.gmra.mrb[0].mxu0 %v1065
    %v1162 = vpop.f32.mrb[0].mxu0
    %v1163 = vadd.f32 %v1051, %v1162
    %v1164 = vpop.f32.mrb[0].mxu0
    %1165 = vmatprep.mubr.f32.mxu0 0.0
    %1166 = vmatmul.mubr.f32.gmra.mrb[0].mxu0 %v1068
    %v1167 = vpop.f32.mrb[0].mxu0
    %v1168 = vadd.f32 %v1051, %v1167
    %v1169 = vpop.f32.mrb[0].mxu0
    %1170 = vmatprep.mubr.f32.mxu0 0.0
    %1171 = vmatmul.mubr.f32.gmra.mrb[0].mxu0 %v1071
    %v1172 = vpop.f32.mrb[0].mxu0
    %v1173 = vadd.f32 %v1051, %v1172
    %v1174 = vpop.f32.mrb[0].mxu0
    %1175 = vmatprep.mubr.f32.mxu0 0.0
    %1176 = vmatmul.mubr.f32.gmra.mrb[0].mxu0 %v1074
    %v1177 = vpop.f32.mrb[0].mxu0
    %v1178 = vadd.f32 %v1051, %v1177
    %v1179 = vpop.f32.mrb[0].mxu0
    %1180 = vdwg.mxu0
    %v1181 = vmax.f32 %v1143, %v1148
    %v1182 = vmax.f32 %v1153, %v1158
    %v1183 = vmax.f32 %v1163, %v1168
    %v1184 = vmax.f32 %v1173, %v1178
    %v1185 = vmax.f32 %v1181, %v1182
    %v1186 = vmax.f32 %v1183, %v1184
    %v1187 = vmax.f32 %v1185, %v1186
    %v1188 = vld [vmem:[#allocation5 + $0xb0] sm:$0xff]
    %v1189 = vld [vmem:[#allocation5 + $0xb8] sm:$0xff]
    %v1190 = vld [vmem:[#allocation5 + $0xc0] sm:$0xff]
    %v1191 = vld [vmem:[#allocation5 + $0xc8] sm:$0xff]
    %v1192 = vld [vmem:[#allocation5 + $0xd0] sm:$0xff]
    %v1193 = vld [vmem:[#allocation5 + $0xd8] sm:$0xff]
    %v1194 = vld [vmem:[#allocation5 + $0xe0] sm:$0xff]
    %v1195 = vld [vmem:[#allocation5 + $0xe8] sm:$0xff]
    %v1196 = vld [vmem:[#allocation5 + $0xf0] sm:$0xff]
    %v1197 = vld [vmem:[#allocation5 + $0xf8] sm:$0xff]
    %v1198 = vld [vmem:[#allocation5 + $0x100] sm:$0xff]
    %v1199 = vld [vmem:[#allocation5 + $0x108] sm:$0xff]
    %v1200 = vld [vmem:[#allocation5 + $0x110] sm:$0xff]
    %v1201 = vld [vmem:[#allocation5 + $0x118] sm:$0xff]
    %v1202 = vld [vmem:[#allocation5 + $0x120] sm:$0xff]
    %v1203 = vld [vmem:[#allocation5 + $0x128] sm:$0xff]
    %v1204 = vld [vmem:[#allocation5 + $0x130] sm:$0x1]
    %v1205 = vlaneseq
    %v1206 = vshrl.u32 %v1205, 7
    %v1207 = vsub.s32 0, %v1206
    %v1208 = vrot.slane %v1204, %v1207
    %1209 = vmatprep.subr.mxu0 0.0
    %1210 = vmatpush1.msra.mxu0 %v1188
    %1211 = vmatprep.subr.mxu0 0.0
    %1212 = vmatpush1.msra.mxu0 %v1189
    %1213 = vmatprep.subr.mxu0 0.0
    %1214 = vmatpush1.msra.mxu0 %v1190
    %1215 = vmatprep.subr.mxu0 0.0
    %1216 = vmatpush1.msra.mxu0 %v1191
    %1217 = vmatprep.subr.mxu0 0.0
    %1218 = vmatpush1.msra.mxu0 %v1192
    %1219 = vmatprep.subr.mxu0 0.0
    %1220 = vmatpush1.msra.mxu0 %v1193
    %1221 = vmatprep.subr.mxu0 0.0
    %1222 = vmatpush1.msra.mxu0 %v1194
    %1223 = vmatprep.subr.mxu0 0.0
    %1224 = vmatpush1.msra.mxu0 %v1195
    %1225 = vmatprep.subr.mxu0 0.0
    %1226 = vmatpush1.msra.mxu0 %v1196
    %1227 = vmatprep.subr.mxu0 0.0
    %1228 = vmatpush1.msra.mxu0 %v1197
    %1229 = vmatprep.subr.mxu0 0.0
    %1230 = vmatpush1.msra.mxu0 %v1198
    %1231 = vmatprep.subr.mxu0 0.0
    %1232 = vmatpush1.msra.mxu0 %v1199
    %1233 = vmatprep.subr.mxu0 0.0
    %1234 = vmatpush1.msra.mxu0 %v1200
    %1235 = vmatprep.subr.mxu0 0.0
    %1236 = vmatpush1.msra.mxu0 %v1201
    %1237 = vmatprep.subr.mxu0 0.0
    %1238 = vmatpush1.msra.mxu0 %v1202
    %1239 = vmatprep.subr.mxu0 0.0
    %1240 = vmatpush1.msra.mxu0 %v1203
    %1241 = vmatprep.subr.mxu0 0.0
    %1242 = vmatpush1.msra.mxu0 0.0
    %1243 = vmatprep.subr.mxu0 0.0
    %1244 = vmatpush1.msra.mxu0 0.0
    %1245 = vmatprep.subr.mxu0 0.0
    %1246 = vmatpush1.msra.mxu0 0.0
    %1247 = vmatprep.subr.mxu0 0.0
    %1248 = vmatpush1.msra.mxu0 0.0
    %1249 = vmatprep.subr.mxu0 0.0
    %1250 = vmatpush1.msra.mxu0 0.0
    %1251 = vmatprep.subr.mxu0 0.0
    %1252 = vmatpush1.msra.mxu0 0.0
    %1253 = vmatprep.subr.mxu0 0.0
    %1254 = vmatpush1.msra.mxu0 0.0
    %1255 = vmatprep.subr.mxu0 0.0
    %1256 = vmatpush1.msra.mxu0 0.0
    %1257 = vmatprep.subr.mxu0 0.0
    %1258 = vmatpush1.msra.mxu0 0.0
    %1259 = vmatprep.subr.mxu0 0.0
    %1260 = vmatpush1.msra.mxu0 0.0
    %1261 = vmatprep.subr.mxu0 0.0
    %1262 = vmatpush1.msra.mxu0 0.0
    %1263 = vmatprep.subr.mxu0 0.0
    %1264 = vmatpush1.msra.mxu0 0.0
    %1265 = vmatprep.subr.mxu0 0.0
    %1266 = vmatpush1.msra.mxu0 0.0
    %1267 = vmatprep.subr.mxu0 0.0
    %1268 = vmatpush1.msra.mxu0 0.0
    %1269 = vmatprep.subr.mxu0 0.0
    %1270 = vmatpush1.msra.mxu0 0.0
    %1271 = vmatprep.subr.mxu0 0.0
    %1272 = vmatpush1.msra.mxu0 0.0
    %1273 = vmatprep.mubr.f32.mxu0 0.0
    %1274 = vmatmul.mubr.f32.gmra.mrb[0].mxu0 %v1187
    %v1275 = vpop.f32.mrb[0].mxu0
    %v1276 = vadd.f32 %v1208, %v1275
    %v1277 = vpop.f32.mrb[0].mxu0
    %1278 = vdwg.mxu0
    %vm1279 = vcmask 15360
    %v1280 = vsel %vm1279, %v1276, -inf
    %1281 = vmax.xlane.f32.xlu0 %v1280
    %v1282 = vpop.xlane.xlu0 %1281
    %v1283 = vsub.f32 %v1276, %v1282
    %v1284 = vmul.f32 %v1283, 1.442695
    %v1285 = vpow.pop %v1284
    %v1286 = vsel %vm1279, %v1285, 0.0
    %1287 = vadd.xlane.f32.xlu0 %v1286
    %v1288 = vpop.xlane.xlu0 %1287
    %v1289 = vlog2.pop %v1288
    %v1290 = vmul.f32 %v1289, 0.6931472
    %v1291 = vsub.f32 %v1283, %v1290
    %1292 = vst.msk [vmem:[%s2] sm:$0xff] %vm1279, %v1291
    // Predicated region
    $region18: #{tpu_custom_call.1} parent=1 // pred_check
      _
    $region19: #{tpu_custom_call.1} parent=1 // pred_check_branch
      %1294 = sbr.rel (0) target = $region21
    $region20: #{tpu_custom_call.1} parent=1 // pred_region
      _
    $region21: #{tpu_custom_call.1} parent=1 // pred_fallthru
      _
    // Predicated region
    $region22: #{tpu_custom_call.1} parent=1 // pred_check
      _
    $region23: #{tpu_custom_call.1} parent=1 // pred_check_branch
      %1296 = sbr.rel (0) target = $region25
    $region24: #{tpu_custom_call.1} parent=1 // pred_region
      _
    $region25: #{tpu_custom_call.1} parent=1 // pred_fallthru
      _
    %1297 = vsyncpa [#allocation4], 1
    %1298 = vsyncpa [#allocation6], 1

</llo_original>
